<compile_context>
chip_gen: v6e
topology: v6e:2x2x1
jax: 0.10.0
libtpu: 0.0.40
codegen_flags: <defaults>
</compile_context>

<pallas_src>
import functools

import jax
import jax.numpy as jnp
from jax.experimental import pallas as pl
from jax.experimental.pallas import tpu as pltpu

LANE = 128                 # final-layer weight zero-padded to this for MXU
DEFAULT_ROW_TILE = 2048    # large tiles amortize the ~0.35 us/step overhead


def _round_up(x, m):
    return ((x + m - 1) // m) * m


def _cdiv(a, b):
    return -(-a // b)


# ------------------------------------------------------------------ kernel ---
def _mlp_kernel(*refs, num_hidden, num_class):
    """Fused MLP head on one row tile.

    refs = (x_ref, w1, b1, ..., wH, bH, w_out, b_out, o_ref)
      x   : [TN, C_in]        f32  (cast to bf16 in-kernel, free VPU filler)
      w_i : [C_i, C_{i+1}]    bf16 (BatchNorm folded in; final padded to 128)
      b_i : [1,  C_{i+1}]     f32  (BatchNorm folded in)
      o   : [TN, NUM_CLASS]   bf16 (narrow, masked lane store)
    Matmuls accumulate in f32 on the MXU; bias add / ReLU stay in f32 vregs;
    activations are re-cast to bf16 only to feed the next MXU pass.
    """
    x_ref = refs[0]
    o_ref = refs[-1]
    wb = refs[1:-1]

    h = x_ref[...].astype(jnp.bfloat16)                 # in-kernel f32->bf16
    for i in range(num_hidden):
        w = wb[2 * i][...]
        b = wb[2 * i + 1][...]
        y = jnp.dot(h, w, preferred_element_type=jnp.float32) + b
        y = jnp.maximum(y, 0.0)                         # ReLU (f32)
        h = y.astype(jnp.bfloat16)                      # Dropout(eval) = id
    w = wb[-2][...]
    b = wb[-1][...]
    y = jnp.dot(h, w, preferred_element_type=jnp.float32) + b   # final Linear
    # Final weight is zero-padded to 128 lanes for a lane-dense MXU pass; only
    # the first NUM_CLASS lanes are stored (same vregs, masked vst).
    o_ref[...] = y[:, :num_class].astype(o_ref.dtype)


# ----------------------------------------------------------- param building ---
def _init_linear(key, c_in, c_out):
    """Deterministic Linear init (PyTorch-style uniform bounds)."""
    kw, kb = jax.random.split(key)
    bound = 1.0 / jnp.sqrt(jnp.float32(c_in))
    # PyTorch stores weight as [c_out, c_in]; we keep [c_in, c_out] for x @ W.
    w = jax.random.uniform(kw, (c_in, c_out), jnp.float32, -bound, bound)
    b = jax.random.uniform(kb, (1, c_out), jnp.float32, -bound, bound)
    return w, b


def _fold_batchnorm(w, b, gamma, beta, running_mean, running_var, eps=1e-5):
    """Fold eval-mode BatchNorm1d into the preceding Linear."""
    # NOTE: if running_var is tiny, scale can be large and the bf16 cast of the
    # folded weight amplifies rounding; keep an f32 weight path if BN stats are
    # extreme. Fine for unit-variance stats used here.
    scale = gamma / jnp.sqrt(running_var + eps)          # [c_out]
    w_f = w * scale[None, :]                             # [c_in, c_out]
    b_f = (b[0] - running_mean) * scale + beta           # [c_out]
    return w_f, b_f[None, :]


def build_classifier_params(key, in_channels_cfg, dims, num_class):
    """Mirror LinearClassifier.__init__; returns [(w_bf16, b_f32), ...].

    Hidden layers have BN folded in; the final layer weight is zero-padded to a
    128-lane width for a lane-dense MXU pass (only NUM_CLASS lanes are stored).
    """
    in_channels = [in_channels_cfg] + list(dims[:-1])
    out_channels = list(dims)
    layers = []
    for c_in, c_out in zip(in_channels, out_channels):
        key, sub = jax.random.split(key)
        w, b = _init_linear(sub, c_in, c_out)
        gamma = jnp.ones((c_out,), jnp.float32)
        beta = jnp.zeros((c_out,), jnp.float32)
        rmean = jnp.zeros((c_out,), jnp.float32)
        rvar = jnp.ones((c_out,), jnp.float32)
        w_f, b_f = _fold_batchnorm(w, b, gamma, beta, rmean, rvar)
        layers.append((w_f.astype(jnp.bfloat16), b_f))           # Linear+BN+ReLU
    key, sub = jax.random.split(key)
    w, b = _init_linear(sub, dims[-1], num_class)
    c_out_pad = _round_up(max(num_class, LANE), LANE)
    w_pad = jnp.zeros((dims[-1], c_out_pad), jnp.float32).at[:, :num_class].set(w)
    b_pad = jnp.zeros((1, c_out_pad), jnp.float32).at[:, :num_class].set(b[0])
    layers.append((w_pad.astype(jnp.bfloat16), b_pad))           # final Linear
    return layers


# ------------------------------------------------------------------ wrapper ---
def mlp_head(x, layers, num_class, *, row_tile=DEFAULT_ROW_TILE):
    """Run the fused head. Returns compact [N, NUM_CLASS] bf16 logits."""
    n, c_in = x.shape

    if n <= 16:
        tn = n                               # full-extent row block (tiny N)
    else:
        # Multiple of 16 (bf16 sublane packing), >= 4 grid blocks so the
        # "parallel" row axis feeds both v7x TensorCores, capped by row_tile.
        tn = min(row_tile, max(16, _round_up(_cdiv(n, 4), 16)))
    grid_rows = _cdiv(n, tn)                 # ragged edge -> Pallas partial tile

    # x / out stream row tiles; weights & biases are VMEM-resident
    # (constant index_map) across all grid steps.
    in_specs = [pl.BlockSpec((tn, c_in), lambda i: (i, 0))]
    flat_args = [x]
    flops = 0
    param_bytes = 0
    for w, b in layers:
        in_specs.append(pl.BlockSpec(w.shape, lambda i: (0, 0)))
        in_specs.append(pl.BlockSpec(b.shape, lambda i: (0, 0)))
        flat_args += [w, b]
        flops += 2 * n * w.shape[0] * w.shape[1]
        param_bytes += w.size * w.dtype.itemsize + b.size * b.dtype.itemsize
    bytes_accessed = (x.size * x.dtype.itemsize        # f32 input stream
                      + n * num_class * 2              # bf16 narrow output
                      + param_bytes)

    kernel = functools.partial(_mlp_kernel, num_hidden=len(layers) - 1,
                               num_class=num_class)
    return pl.pallas_call(
        kernel,
        grid=(grid_rows,),
        in_specs=in_specs,
        out_specs=pl.BlockSpec((tn, num_class), lambda i: (i, 0)),
        out_shape=jax.ShapeDtypeStruct((n, num_class), jnp.bfloat16),
        compiler_params=pltpu.CompilerParams(
            dimension_semantics=("parallel",),        # shard row tiles on v7x TCs
            vmem_limit_bytes=32 * 1024 * 1024,        # headroom on v7x's 64 MiB
        ),
        cost_estimate=pl.CostEstimate(
            flops=flops, transcendentals=0, bytes_accessed=bytes_accessed),
    )(*flat_args)


def linear_classifier_forward(data_dic, layers, num_class, *,
                              row_tile=DEFAULT_ROW_TILE):
    x = data_dic["point_features"]
    # Compact (N, NUM_CLASS) logits straight from the kernel: no post-kernel
    # slice/copy pass over the padded output.
    data_dic["pred_score_logits"] = mlp_head(x, layers, num_class,
                                             row_tile=row_tile)
    return data_dic


# --------------------------------------------------------------------- main ---
if __name__ == "__main__":
    # Synthetic cfg: IN_CHANNELS=32, DIMS=[64, 32], NUM_CLASS=10
    IN_CHANNELS = 32
    DIMS = [64, 32]
    NUM_CLASS = 10
    N_POINTS = 1000   # not a multiple of the row tile -> exercises partial tile

    key = jax.random.PRNGKey(0)
    k_params, k_x = jax.random.split(key)

    layers = build_classifier_params(k_params, IN_CHANNELS, DIMS, NUM_CLASS)
    x = jax.random.normal(k_x, (N_POINTS, IN_CHANNELS), jnp.float32)

    data_dic = {"point_features": x}
    out_dic = linear_classifier_forward(data_dic, layers, NUM_CLASS)
    logits = jax.block_until_ready(out_dic["pred_score_logits"])

    # Reference: same bf16-weight / f32-accumulate / bf16-output math in JAX.
    h = x.astype(jnp.bfloat16)
    ref = None
    for li, (w, b) in enumerate(layers):
        y = jnp.dot(h, w, preferred_element_type=jnp.float32) + b
        if li < len(layers) - 1:
            h = jnp.maximum(y, 0.0).astype(jnp.bfloat16)
        else:
            ref = y[:, :NUM_CLASS].astype(jnp.bfloat16)

    assert logits.shape == (N_POINTS, NUM_CLASS)
    assert logits.dtype == jnp.bfloat16
    lf = logits.astype(jnp.float32)
    rf = ref.astype(jnp.float32)
    assert jnp.allclose(lf, rf, atol=1e-2, rtol=1e-2), float(
        jnp.max(jnp.abs(lf - rf)))

    print("KERNEL_OK")
</pallas_src>

<mosaic_0001>
module attributes {stable_mosaic.version = 11 : i64} {
  func.func @_mlp_kernel(%arg0: i32, %arg1: memref<256x32xf32, #tpu.memory_space<vmem>>, %arg2: memref<32x64xbf16, #tpu.memory_space<vmem>>, %arg3: memref<1x64xf32, #tpu.memory_space<vmem>>, %arg4: memref<64x32xbf16, #tpu.memory_space<vmem>>, %arg5: memref<1x32xf32, #tpu.memory_space<vmem>>, %arg6: memref<32x128xbf16, #tpu.memory_space<vmem>>, %arg7: memref<1x128xf32, #tpu.memory_space<vmem>>, %arg8: memref<256x10xbf16, #tpu.memory_space<vmem>>) attributes {dimension_semantics = [#tpu.dimension_semantics<parallel>], iteration_bounds = array<i64: 4>, scalar_prefetch = 0 : i64, scratch_operands = 0 : i64, tpu.core_type = #tpu.core_type<tc>, window_params = [{transform_indices = @transform_0, window_bounds = array<i64: 256, 32>}, {pipeline_mode = #tpu.pipeline_mode<synchronous>, transform_indices = @transform_1, window_bounds = array<i64: 32, 64>}, {pipeline_mode = #tpu.pipeline_mode<synchronous>, transform_indices = @transform_2, window_bounds = array<i64: 1, 64>}, {pipeline_mode = #tpu.pipeline_mode<synchronous>, transform_indices = @transform_3, window_bounds = array<i64: 64, 32>}, {pipeline_mode = #tpu.pipeline_mode<synchronous>, transform_indices = @transform_4, window_bounds = array<i64: 1, 32>}, {pipeline_mode = #tpu.pipeline_mode<synchronous>, transform_indices = @transform_5, window_bounds = array<i64: 32, 128>}, {pipeline_mode = #tpu.pipeline_mode<synchronous>, transform_indices = @transform_6, window_bounds = array<i64: 1, 128>}, {transform_indices = @transform_7, window_bounds = array<i64: 256, 10>}]} {
    %c0 = arith.constant 0 : index
    %c0_0 = arith.constant 0 : index
    %0 = vector.load %arg1[%c0, %c0_0] : memref<256x32xf32, #tpu.memory_space<vmem>>, vector<256x32xf32>
    %1 = arith.truncf %0 : vector<256x32xf32> to vector<256x32xbf16>
    %c0_1 = arith.constant 0 : index
    %c0_2 = arith.constant 0 : index
    %2 = vector.load %arg2[%c0_1, %c0_2] : memref<32x64xbf16, #tpu.memory_space<vmem>>, vector<32x64xbf16>
    %c0_3 = arith.constant 0 : index
    %c0_4 = arith.constant 0 : index
    %3 = vector.load %arg3[%c0_3, %c0_4] : memref<1x64xf32, #tpu.memory_space<vmem>>, vector<1x64xf32>
    %cst = arith.constant dense<0.000000e+00> : vector<256x64xf32>
    %4 = tpu.matmul %1, %2, %cst {dimension_numbers = #tpu.dot_dimension_numbers<[1], [0], [0], [1], [0, 0, 1, 1], [], []>} : vector<256x32xbf16>, vector<32x64xbf16>, vector<256x64xf32> -> vector<256x64xf32>
    %5 = vector.broadcast %3 : vector<1x64xf32> to vector<256x64xf32>
    %6 = arith.addf %4, %5 : vector<256x64xf32>
    %cst_5 = arith.constant 0.000000e+00 : f32
    %7 = vector.broadcast %cst_5 : f32 to vector<256x64xf32>
    %8 = arith.maximumf %6, %7 : vector<256x64xf32>
    %9 = arith.truncf %8 : vector<256x64xf32> to vector<256x64xbf16>
    %c0_6 = arith.constant 0 : index
    %c0_7 = arith.constant 0 : index
    %10 = vector.load %arg4[%c0_6, %c0_7] : memref<64x32xbf16, #tpu.memory_space<vmem>>, vector<64x32xbf16>
    %c0_8 = arith.constant 0 : index
    %c0_9 = arith.constant 0 : index
    %11 = vector.load %arg5[%c0_8, %c0_9] : memref<1x32xf32, #tpu.memory_space<vmem>>, vector<1x32xf32>
    %cst_10 = arith.constant dense<0.000000e+00> : vector<256x32xf32>
    %12 = tpu.matmul %9, %10, %cst_10 {dimension_numbers = #tpu.dot_dimension_numbers<[1], [0], [0], [1], [0, 0, 1, 1], [], []>} : vector<256x64xbf16>, vector<64x32xbf16>, vector<256x32xf32> -> vector<256x32xf32>
    %13 = vector.broadcast %11 : vector<1x32xf32> to vector<256x32xf32>
    %14 = arith.addf %12, %13 : vector<256x32xf32>
    %cst_11 = arith.constant 0.000000e+00 : f32
    %15 = vector.broadcast %cst_11 : f32 to vector<256x32xf32>
    %16 = arith.maximumf %14, %15 : vector<256x32xf32>
    %17 = arith.truncf %16 : vector<256x32xf32> to vector<256x32xbf16>
    %c0_12 = arith.constant 0 : index
    %c0_13 = arith.constant 0 : index
    %18 = vector.load %arg6[%c0_12, %c0_13] : memref<32x128xbf16, #tpu.memory_space<vmem>>, vector<32x128xbf16>
    %c0_14 = arith.constant 0 : index
    %c0_15 = arith.constant 0 : index
    %19 = vector.load %arg7[%c0_14, %c0_15] : memref<1x128xf32, #tpu.memory_space<vmem>>, vector<1x128xf32>
    %cst_16 = arith.constant dense<0.000000e+00> : vector<256x128xf32>
    %20 = tpu.matmul %17, %18, %cst_16 {dimension_numbers = #tpu.dot_dimension_numbers<[1], [0], [0], [1], [0, 0, 1, 1], [], []>} : vector<256x32xbf16>, vector<32x128xbf16>, vector<256x128xf32> -> vector<256x128xf32>
    %21 = vector.broadcast %19 : vector<1x128xf32> to vector<256x128xf32>
    %22 = arith.addf %20, %21 : vector<256x128xf32>
    %23 = vector.extract_strided_slice %22 {offsets = [0, 0], sizes = [256, 10], strides = [1, 1]} : vector<256x128xf32> to vector<256x10xf32>
    %24 = arith.truncf %23 : vector<256x10xf32> to vector<256x10xbf16>
    %c0_17 = arith.constant 0 : index
    %c0_18 = arith.constant 0 : index
    %25 = vector.load %arg8[%c0_17, %c0_18] : memref<256x10xbf16, #tpu.memory_space<vmem>>, vector<256x10xbf16>
    tpu.vector_store %arg8[%c0_17, %c0_18], %24 {strides = array<i32>} : memref<256x10xbf16, #tpu.memory_space<vmem>>, vector<256x10xbf16>,
    return
  }
  func.func @transform_0(%arg0: i32) -> (i32, i32) {
    %c0_i32 = arith.constant 0 : i32
    %c0_i32_0 = arith.constant 0 : i32
    return %arg0, %c0_i32 : i32, i32
  }
  func.func @transform_1(%arg0: i32) -> (i32, i32) {
    %c0_i32 = arith.constant 0 : i32
    %c0_i32_0 = arith.constant 0 : i32
    %c0_i32_1 = arith.constant 0 : i32
    return %c0_i32, %c0_i32_0 : i32, i32
  }
  func.func @transform_2(%arg0: i32) -> (i32, i32) {
    %c0_i32 = arith.constant 0 : i32
    %c0_i32_0 = arith.constant 0 : i32
    %c0_i32_1 = arith.constant 0 : i32
    return %c0_i32, %c0_i32_0 : i32, i32
  }
  func.func @transform_3(%arg0: i32) -> (i32, i32) {
    %c0_i32 = arith.constant 0 : i32
    %c0_i32_0 = arith.constant 0 : i32
    %c0_i32_1 = arith.constant 0 : i32
    return %c0_i32, %c0_i32_0 : i32, i32
  }
  func.func @transform_4(%arg0: i32) -> (i32, i32) {
    %c0_i32 = arith.constant 0 : i32
    %c0_i32_0 = arith.constant 0 : i32
    %c0_i32_1 = arith.constant 0 : i32
    return %c0_i32, %c0_i32_0 : i32, i32
  }
  func.func @transform_5(%arg0: i32) -> (i32, i32) {
    %c0_i32 = arith.constant 0 : i32
    %c0_i32_0 = arith.constant 0 : i32
    %c0_i32_1 = arith.constant 0 : i32
    return %c0_i32, %c0_i32_0 : i32, i32
  }
  func.func @transform_6(%arg0: i32) -> (i32, i32) {
    %c0_i32 = arith.constant 0 : i32
    %c0_i32_0 = arith.constant 0 : i32
    %c0_i32_1 = arith.constant 0 : i32
    return %c0_i32, %c0_i32_0 : i32, i32
  }
  func.func @transform_7(%arg0: i32) -> (i32, i32) {
    %c0_i32 = arith.constant 0 : i32
    %c0_i32_0 = arith.constant 0 : i32
    return %arg0, %c0_i32 : i32, i32
  }
}

</mosaic_0001>

<llo_original>
// kernel: tpu_custom_call.1
$region0: #{tpu_custom_call.1}
  #allocation0 [shape = 'u32[]', space=smem, size = 0x4, offset = 0x4, fixed_abs, tag = 'smem constant byte address 0x4 - core index']
  #allocation1 [shape = 'u32[144,128]{1,0:T(1,128)}', space=vmem, size = 0x12000, scoped, tag = 'internal scratch']
  %s0 = inlined_call_operand.vmem [shape: f32[1000,32], index: 0, kind: input, shape index: {}]
  %s1 = inlined_call_operand.vmem [shape: bf16[32,64], index: 1, kind: input, shape index: {}]
  %s2 = inlined_call_operand.vmem [shape: f32[1,64], index: 2, kind: input, shape index: {}]
  %s3 = inlined_call_operand.vmem [shape: bf16[64,32], index: 3, kind: input, shape index: {}]
  %s4 = inlined_call_operand.vmem [shape: f32[1,32], index: 4, kind: input, shape index: {}]
  %s5 = inlined_call_operand.vmem [shape: bf16[32,128], index: 5, kind: input, shape index: {}]
  %s6 = inlined_call_operand.vmem [shape: f32[1,128], index: 6, kind: input, shape index: {}]
  %s7 = inlined_call_operand.vmem [shape: bf16[1000,10], index: 7, kind: output, shape index: {}]
  %s8 = sld [smem:[#allocation0]]
  $region105: #{tpu_custom_call.1} parent=0
    _
  %s10 = ssub.s32 1, %s8
  %s11 = scalar_select 0, %s10, %s8
  $region1: #{tpu_custom_call.1} parent=0
    #allocation2 [shape = 'u8[131072]{0}', space=vmem, size = 0x20000, scoped, tag = 'output window, operand 0']
    loop: start=0, step=1, limit=6
    $region2: #{tpu_custom_call.1} parent=1 // loop_pre_header
      _
    $region3: #{tpu_custom_call.1} parent=1 // loop_header
      %s13 = sphi 0, %s17
      %p14 = scmp.ge.s32.totalorder %s13, 6
      %s23 = sphi 0, %s25
      %s26 = sphi 0, %s23
      %s27 = sphi 0, %s26
      %s43 = sphi 0, %s27
      %s47 = sphi 0, %s47
      %s49 = sphi 0, %s47
      %s50 = sphi 0, %s49
      %s64 = sphi 0, %s50
      %s68 = sphi 0, %s68
      %s70 = sphi 0, %s68
      %s71 = sphi 0, %s70
      %s85 = sphi 0, %s71
      %s89 = sphi 0, %s89
      %s91 = sphi 0, %s89
      %s92 = sphi 0, %s91
      %s106 = sphi 0, %s92
      %s110 = sphi 0, %s110
      %s112 = sphi 0, %s110
      %s113 = sphi 0, %s112
      %s127 = sphi 0, %s113
      %s131 = sphi 0, %s131
      %s133 = sphi 0, %s131
      %s134 = sphi 0, %s133
      %s148 = sphi 0, %s134
      %s152 = sphi 0, %s152
      %s154 = sphi 0, %s152
      %s155 = sphi 0, %s154
      %s169 = sphi 0, %s155
      %s175 = sphi 0, %s177
      %s178 = sphi 0, %s175
      %s179 = sphi 0, %s178
      %s195 = sphi 0, %s179
    $region4: #{tpu_custom_call.1} parent=1 // loop_header_branch
      %16 = sbr.rel (%p14) target = $region8
    $region5: #{tpu_custom_call.1} parent=1 // loop_body
      %s18 = ssub.s32 %s13, 1
      %s19 = ssub.s32 %s13, 2
      %s20 = sadd.s32 %s13, 1
      %s21 = ssub.s32 %s13, %s20
      %p22 = scmp.eq.s32.totalorder %s21, 0
      %s24 = sadd.s32 %s23, 1
      %s25 = scalar_select %p22, %s23, %s24
      %p28 = pneg %p22
      %p29 = scmp.eq.s32.totalorder %s13, 3
      %p30 = por %p28, %p29
      %p31 = scmp.ne.s32.totalorder %s23, %s26
      %p32 = scmp.eq.s32.totalorder %s13, 0
      %p33 = por %p31, %p32
      %p34 = scmp.ne.s32.totalorder %s23, %s26
      %p35 = scmp.eq.s32.totalorder %s18, 3
      %p36 = por %p34, %p35
      %p37 = scmp.ne.s32.totalorder %s26, %s27
      %p38 = scmp.eq.s32.totalorder %s18, 0
      %p39 = por %p37, %p38
      %p40 = scmp.ne.s32.totalorder %s26, %s27
      %p41 = scmp.eq.s32.totalorder %s19, 3
      %p42 = por %p40, %p41
      %p44 = scmp.ne.s32.totalorder %s27, %s43
      %p45 = scmp.eq.s32.totalorder %s19, 0
      %p46 = por %p44, %p45
      %s48 = sadd.s32 %s47, 1
      %p51 = scmp.eq.s32.totalorder %s13, 3
      %p52 = scmp.ne.s32.totalorder %s47, %s49
      %p53 = scmp.eq.s32.totalorder %s13, 0
      %p54 = por %p52, %p53
      %p55 = scmp.ne.s32.totalorder %s47, %s49
      %p56 = scmp.eq.s32.totalorder %s18, 3
      %p57 = por %p55, %p56
      %p58 = scmp.ne.s32.totalorder %s49, %s50
      %p59 = scmp.eq.s32.totalorder %s18, 0
      %p60 = por %p58, %p59
      %p61 = scmp.ne.s32.totalorder %s49, %s50
      %p62 = scmp.eq.s32.totalorder %s19, 3
      %p63 = por %p61, %p62
      %p65 = scmp.ne.s32.totalorder %s50, %s64
      %p66 = scmp.eq.s32.totalorder %s19, 0
      %p67 = por %p65, %p66
      %s69 = sadd.s32 %s68, 1
      %p72 = scmp.eq.s32.totalorder %s13, 3
      %p73 = scmp.ne.s32.totalorder %s68, %s70
      %p74 = scmp.eq.s32.totalorder %s13, 0
      %p75 = por %p73, %p74
      %p76 = scmp.ne.s32.totalorder %s68, %s70
      %p77 = scmp.eq.s32.totalorder %s18, 3
      %p78 = por %p76, %p77
      %p79 = scmp.ne.s32.totalorder %s70, %s71
      %p80 = scmp.eq.s32.totalorder %s18, 0
      %p81 = por %p79, %p80
      %p82 = scmp.ne.s32.totalorder %s70, %s71
      %p83 = scmp.eq.s32.totalorder %s19, 3
      %p84 = por %p82, %p83
      %p86 = scmp.ne.s32.totalorder %s71, %s85
      %p87 = scmp.eq.s32.totalorder %s19, 0
      %p88 = por %p86, %p87
      %s90 = sadd.s32 %s89, 1
      %p93 = scmp.eq.s32.totalorder %s13, 3
      %p94 = scmp.ne.s32.totalorder %s89, %s91
      %p95 = scmp.eq.s32.totalorder %s13, 0
      %p96 = por %p94, %p95
      %p97 = scmp.ne.s32.totalorder %s89, %s91
      %p98 = scmp.eq.s32.totalorder %s18, 3
      %p99 = por %p97, %p98
      %p100 = scmp.ne.s32.totalorder %s91, %s92
      %p101 = scmp.eq.s32.totalorder %s18, 0
      %p102 = por %p100, %p101
      %p103 = scmp.ne.s32.totalorder %s91, %s92
      %p104 = scmp.eq.s32.totalorder %s19, 3
      %p105 = por %p103, %p104
      %p107 = scmp.ne.s32.totalorder %s92, %s106
      %p108 = scmp.eq.s32.totalorder %s19, 0
      %p109 = por %p107, %p108
      %s111 = sadd.s32 %s110, 1
      %p114 = scmp.eq.s32.totalorder %s13, 3
      %p115 = scmp.ne.s32.totalorder %s110, %s112
      %p116 = scmp.eq.s32.totalorder %s13, 0
      %p117 = por %p115, %p116
      %p118 = scmp.ne.s32.totalorder %s110, %s112
      %p119 = scmp.eq.s32.totalorder %s18, 3
      %p120 = por %p118, %p119
      %p121 = scmp.ne.s32.totalorder %s112, %s113
      %p122 = scmp.eq.s32.totalorder %s18, 0
      %p123 = por %p121, %p122
      %p124 = scmp.ne.s32.totalorder %s112, %s113
      %p125 = scmp.eq.s32.totalorder %s19, 3
      %p126 = por %p124, %p125
      %p128 = scmp.ne.s32.totalorder %s113, %s127
      %p129 = scmp.eq.s32.totalorder %s19, 0
      %p130 = por %p128, %p129
      %s132 = sadd.s32 %s131, 1
      %p135 = scmp.eq.s32.totalorder %s13, 3
      %p136 = scmp.ne.s32.totalorder %s131, %s133
      %p137 = scmp.eq.s32.totalorder %s13, 0
      %p138 = por %p136, %p137
      %p139 = scmp.ne.s32.totalorder %s131, %s133
      %p140 = scmp.eq.s32.totalorder %s18, 3
      %p141 = por %p139, %p140
      %p142 = scmp.ne.s32.totalorder %s133, %s134
      %p143 = scmp.eq.s32.totalorder %s18, 0
      %p144 = por %p142, %p143
      %p145 = scmp.ne.s32.totalorder %s133, %s134
      %p146 = scmp.eq.s32.totalorder %s19, 3
      %p147 = por %p145, %p146
      %p149 = scmp.ne.s32.totalorder %s134, %s148
      %p150 = scmp.eq.s32.totalorder %s19, 0
      %p151 = por %p149, %p150
      %s153 = sadd.s32 %s152, 1
      %p156 = scmp.eq.s32.totalorder %s13, 3
      %p157 = scmp.ne.s32.totalorder %s152, %s154
      %p158 = scmp.eq.s32.totalorder %s13, 0
      %p159 = por %p157, %p158
      %p160 = scmp.ne.s32.totalorder %s152, %s154
      %p161 = scmp.eq.s32.totalorder %s18, 3
      %p162 = por %p160, %p161
      %p163 = scmp.ne.s32.totalorder %s154, %s155
      %p164 = scmp.eq.s32.totalorder %s18, 0
      %p165 = por %p163, %p164
      %p166 = scmp.ne.s32.totalorder %s154, %s155
      %p167 = scmp.eq.s32.totalorder %s19, 3
      %p168 = por %p166, %p167
      %p170 = scmp.ne.s32.totalorder %s155, %s169
      %p171 = scmp.eq.s32.totalorder %s19, 0
      %p172 = por %p170, %p171
      %s173 = ssub.s32 %s13, %s20
      %p174 = scmp.eq.s32.totalorder %s173, 0
      %s176 = sadd.s32 %s175, 1
      %s177 = scalar_select %p174, %s175, %s176
      %p180 = pneg %p174
      %p181 = scmp.eq.s32.totalorder %s13, 3
      %p182 = por %p180, %p181
      %p183 = scmp.ne.s32.totalorder %s175, %s178
      %p184 = scmp.eq.s32.totalorder %s13, 0
      %p185 = por %p183, %p184
      %p186 = scmp.ne.s32.totalorder %s175, %s178
      %p187 = scmp.eq.s32.totalorder %s18, 3
      %p188 = por %p186, %p187
      %p189 = scmp.ne.s32.totalorder %s178, %s179
      %p190 = scmp.eq.s32.totalorder %s18, 0
      %p191 = por %p189, %p190
      %p192 = scmp.ne.s32.totalorder %s178, %s179
      %p193 = scmp.eq.s32.totalorder %s19, 3
      %p194 = por %p192, %p193
      %p196 = scmp.ne.s32.totalorder %s179, %s195
      %p197 = scmp.eq.s32.totalorder %s19, 0
      %p198 = por %p196, %p197
      %p199 = scmp.le.s32.totalorder 1, %s13
      %p200 = scmp.lt.s32.totalorder %s13, 5
      %p201 = pnand %p199, %p200
      %p202 = pneg %p201
      // Predicated region
      $region9: #{tpu_custom_call.1} parent=5 // pred_check
        _
      $region10: #{tpu_custom_call.1} parent=5 // pred_check_branch
        %204 = sbr.rel (%p201) target = $region12
      $region11: #{tpu_custom_call.1} parent=5 // pred_region
        %s205 = ssub.s32 %s13, 1
        // Predicated region
        $region13: #{tpu_custom_call.1} parent=11 // pred_check
          %p206 = pneg %p60
        $region14: #{tpu_custom_call.1} parent=11 // pred_check_branch
          %208 = sbr.rel (%p206) target = $region16
        $region15: #{tpu_custom_call.1} parent=11 // pred_region
          _
        $region16: #{tpu_custom_call.1} parent=11 // pred_fallthru
          _
        // Predicated region
        $region17: #{tpu_custom_call.1} parent=11 // pred_check
          %p209 = pneg %p81
        $region18: #{tpu_custom_call.1} parent=11 // pred_check_branch
          %211 = sbr.rel (%p209) target = $region20
        $region19: #{tpu_custom_call.1} parent=11 // pred_region
          _
        $region20: #{tpu_custom_call.1} parent=11 // pred_fallthru
          _
        // Predicated region
        $region21: #{tpu_custom_call.1} parent=11 // pred_check
          %p212 = pneg %p102
        $region22: #{tpu_custom_call.1} parent=11 // pred_check_branch
          %214 = sbr.rel (%p212) target = $region24
        $region23: #{tpu_custom_call.1} parent=11 // pred_region
          _
        $region24: #{tpu_custom_call.1} parent=11 // pred_fallthru
          _
        // Predicated region
        $region25: #{tpu_custom_call.1} parent=11 // pred_check
          %p215 = pneg %p123
        $region26: #{tpu_custom_call.1} parent=11 // pred_check_branch
          %217 = sbr.rel (%p215) target = $region28
        $region27: #{tpu_custom_call.1} parent=11 // pred_region
          _
        $region28: #{tpu_custom_call.1} parent=11 // pred_fallthru
          _
        // Predicated region
        $region29: #{tpu_custom_call.1} parent=11 // pred_check
          %p218 = pneg %p144
        $region30: #{tpu_custom_call.1} parent=11 // pred_check_branch
          %220 = sbr.rel (%p218) target = $region32
        $region31: #{tpu_custom_call.1} parent=11 // pred_region
          _
        $region32: #{tpu_custom_call.1} parent=11 // pred_fallthru
          _
        // Predicated region
        $region33: #{tpu_custom_call.1} parent=11 // pred_check
          %p221 = pneg %p165
        $region34: #{tpu_custom_call.1} parent=11 // pred_check_branch
          %223 = sbr.rel (%p221) target = $region36
        $region35: #{tpu_custom_call.1} parent=11 // pred_region
          _
        $region36: #{tpu_custom_call.1} parent=11 // pred_fallthru
          _
      $region12: #{tpu_custom_call.1} parent=5 // pred_fallthru
        _
      %p224 = scmp.lt.s32.totalorder %s13, 4
      // Predicated region
      $region37: #{tpu_custom_call.1} parent=5 // pred_check
        %p225 = pneg %p224
      $region38: #{tpu_custom_call.1} parent=5 // pred_check_branch
        %227 = sbr.rel (%p225) target = $region40
      $region39: #{tpu_custom_call.1} parent=5 // pred_region
        // Predicated region
        $region41: #{tpu_custom_call.1} parent=39 // pred_check
          %p228 = pneg %p33
        $region42: #{tpu_custom_call.1} parent=39 // pred_check_branch
          %230 = sbr.rel (%p228) target = $region44
        $region43: #{tpu_custom_call.1} parent=39 // pred_region
          %s231 = smul.u32 32, %s13
          %s232 = ssub.s32 125, %s231
          %p233 = scmp.lt.s32.totalorder %s232, 32
          %s234 = scalar_select %p233, %s232, 32
          %s235 = smul.u32 128, %s234
          %p236 = scmp.lt.s32.totalorder %s231, 124
          %s237 = scalar_select %p236, %s231, 124
          %s238 = smul.addr %s237, 8
          %s239 = scalar_lea.vmem %s0, %s238
          %s240 = smul.u32 32, %s13
          %s241 = ssub.s32 125, %s240
          %p242 = scmp.lt.s32.totalorder %s241, 32
          %s243 = scalar_select %p242, %s241, 32
          %s244 = smul.u32 128, %s243
        $region44: #{tpu_custom_call.1} parent=39 // pred_fallthru
          _
      $region40: #{tpu_custom_call.1} parent=5 // pred_fallthru
        _
      %p245 = scmp.le.s32.totalorder 1, %s13
      %p246 = scmp.lt.s32.totalorder %s13, 5
      %p247 = pnand %p245, %p246
      %p248 = pneg %p247
      // Predicated region
      $region45: #{tpu_custom_call.1} parent=5 // pred_check
        _
      $region46: #{tpu_custom_call.1} parent=5 // pred_check_branch
        %250 = sbr.rel (%p247) target = $region48
      $region47: #{tpu_custom_call.1} parent=5 // pred_region
        %s251 = ssub.s32 %s13, 1
        %s252 = smul.u32 32, %s18
        %s253 = ssub.s32 125, %s252
        %p254 = scmp.lt.s32.totalorder %s253, 32
        %s255 = scalar_select %p254, %s253, 32
        %s256 = smul.u32 128, %s255
        %p257 = scmp.lt.s32.totalorder %s252, 124
        %s258 = scalar_select %p257, %s252, 124
        %s259 = smul.addr %s258, 8
        %s260 = scalar_lea.vmem %s0, %s259
        %p261 = pneg %p39
        %p262 = pneg %p36
        %p263 = pneg %p60
        %p264 = pneg %p57
        %p265 = pneg %p81
        %p266 = pneg %p78
        %p267 = pneg %p102
        %p268 = pneg %p99
        %p269 = pneg %p123
        %p270 = pneg %p120
        %p271 = pneg %p144
        %p272 = pneg %p141
        %p273 = pneg %p165
        %p274 = pneg %p162
        %p275 = pneg %p191
        %p276 = pneg %p188
        %s277 = sand.u32 %s178, 1
        %s278 = sand.u32 %s178, 1
        %s279 = smul.addr %s278, 128
        %s280 = scalar_lea.vmem [#allocation2], %s279
        %s281 = smul.u32 32, %s18
        %s282 = ssub.s32 125, %s281
        %p283 = scmp.lt.s32.totalorder %s282, 32
        %s284 = scalar_select %p283, %s282, 32
        %s285 = smul.u32 128, %s284
        %p286 = scmp.lt.s32.totalorder %s281, 124
        %s287 = scalar_select %p286, %s281, 124
        %s288 = smul.addr %s287, 8
        %s289 = scalar_lea.vmem %s0, %s288
        %s290 = smul.u32 32, %s18
        %s291 = ssub.s32 125, %s290
        %p292 = scmp.lt.s32.totalorder %s291, 32
        %s293 = scalar_select %p292, %s291, 32
        %s294 = smul.u32 128, %s293
        %s295 = smul.u32 32, %s18
        %s296 = ssub.s32 125, %s295
        %p297 = scmp.lt.s32.totalorder %s296, 32
        %s298 = scalar_select %p297, %s296, 32
        %s299 = smul.u32 64, %s298
        %v301 = vld [vmem:[%s289] sm:$0xff]
        %v302 = vld [vmem:[%s289 + $0x8] sm:$0xff]
        %v303 = vld [vmem:[%s289 + $0x10] sm:$0xff]
        %v304 = vld [vmem:[%s289 + $0x18] sm:$0xff]
        %v305 = vld [vmem:[%s289 + $0x20] sm:$0xff]
        %v306 = vld [vmem:[%s289 + $0x28] sm:$0xff]
        %v307 = vld [vmem:[%s289 + $0x30] sm:$0xff]
        %v308 = vld [vmem:[%s289 + $0x38] sm:$0xff]
        %v309 = vld [vmem:[%s289 + $0x40] sm:$0xff]
        %v310 = vld [vmem:[%s289 + $0x48] sm:$0xff]
        %v311 = vld [vmem:[%s289 + $0x50] sm:$0xff]
        %v312 = vld [vmem:[%s289 + $0x58] sm:$0xff]
        %v313 = vld [vmem:[%s289 + $0x60] sm:$0xff]
        %v314 = vld [vmem:[%s289 + $0x68] sm:$0xff]
        %v315 = vld [vmem:[%s289 + $0x70] sm:$0xff]
        %v316 = vld [vmem:[%s289 + $0x78] sm:$0xff]
        %v317 = vld [vmem:[%s289 + $0x80] sm:$0xff]
        %v318 = vld [vmem:[%s289 + $0x88] sm:$0xff]
        %v319 = vld [vmem:[%s289 + $0x90] sm:$0xff]
        %v320 = vld [vmem:[%s289 + $0x98] sm:$0xff]
        %v321 = vld [vmem:[%s289 + $0xa0] sm:$0xff]
        %v322 = vld [vmem:[%s289 + $0xa8] sm:$0xff]
        %v323 = vld [vmem:[%s289 + $0xb0] sm:$0xff]
        %v324 = vld [vmem:[%s289 + $0xb8] sm:$0xff]
        %v325 = vld [vmem:[%s289 + $0xc0] sm:$0xff]
        %v326 = vld [vmem:[%s289 + $0xc8] sm:$0xff]
        %v327 = vld [vmem:[%s289 + $0xd0] sm:$0xff]
        %v328 = vld [vmem:[%s289 + $0xd8] sm:$0xff]
        %v329 = vld [vmem:[%s289 + $0xe0] sm:$0xff]
        %v330 = vld [vmem:[%s289 + $0xe8] sm:$0xff]
        %v331 = vld [vmem:[%s289 + $0xf0] sm:$0xff]
        %v332 = vld [vmem:[%s289 + $0xf8] sm:$0xff]
        %v333 = vpack.c.bf16 %v302, %v301
        %v334 = vpack.c.bf16 %v304, %v303
        %v335 = vpack.c.bf16 %v306, %v305
        %v336 = vpack.c.bf16 %v308, %v307
        %v337 = vpack.c.bf16 %v310, %v309
        %v338 = vpack.c.bf16 %v312, %v311
        %v339 = vpack.c.bf16 %v314, %v313
        %v340 = vpack.c.bf16 %v316, %v315
        %v341 = vpack.c.bf16 %v318, %v317
        %v342 = vpack.c.bf16 %v320, %v319
        %v343 = vpack.c.bf16 %v322, %v321
        %v344 = vpack.c.bf16 %v324, %v323
        %v345 = vpack.c.bf16 %v326, %v325
        %v346 = vpack.c.bf16 %v328, %v327
        %v347 = vpack.c.bf16 %v330, %v329
        %v348 = vpack.c.bf16 %v332, %v331
        %v349 = vld [vmem:[%s1] sm:$0xf]
        %v350 = vld [vmem:[%s1 + $0x4] sm:$0xf]
        %v351 = vld [vmem:[%s1 + $0x8] sm:$0xf]
        %v352 = vld [vmem:[%s1 + $0xc] sm:$0xf]
        %v353 = vld [vmem:[%s2] sm:$0x1]
        %v355 = vlaneseq
        %v356 = vshrl.u32 %v355, 7
        %v357 = vsub.s32 0, %v356
        %v358 = vrot.slane %v353, %v357
        %v364 = vunpack.c.l.b16 %v349
        %v365 = vunpack.c.l.b16 %v350
        %v366 = vunpack.c.l.b16 %v351
        %v367 = vunpack.c.l.b16 %v352
        %v368 = vpack.c.b16 %v365, %v364
        %v369 = vpack.c.b16 %v367, %v366
        %vm372 = vcmask 261120
        %v374 = vsel %vm372, %v333, 0
        %v377 = vsel %vm372, %v334, 0
        %v380 = vsel %vm372, %v335, 0
        %v383 = vsel %vm372, %v336, 0
        %v386 = vsel %vm372, %v337, 0
        %v389 = vsel %vm372, %v338, 0
        %v392 = vsel %vm372, %v339, 0
        %v395 = vsel %vm372, %v340, 0
        %v398 = vsel %vm372, %v341, 0
        %v401 = vsel %vm372, %v342, 0
        %v404 = vsel %vm372, %v343, 0
        %v407 = vsel %vm372, %v344, 0
        %v410 = vsel %vm372, %v345, 0
        %v413 = vsel %vm372, %v346, 0
        %v416 = vsel %vm372, %v347, 0
        %v419 = vsel %vm372, %v348, 0
        %421 = vmatprep.subr.bf16.mxu0 0
        %422 = vmatpush1.bf16.msra.mxu0 0
        %423 = vmatprep.subr.bf16.mxu0 0
        %424 = vmatpush1.bf16.msra.mxu0 0
        %425 = vmatprep.subr.bf16.mxu0 0
        %426 = vmatpush1.bf16.msra.mxu0 0
        %427 = vmatprep.subr.bf16.mxu0 0
        %428 = vmatpush1.bf16.msra.mxu0 0
        %429 = vmatprep.subr.bf16.mxu0 0
        %430 = vmatpush1.bf16.msra.mxu0 0
        %431 = vmatprep.subr.bf16.mxu0 0
        %432 = vmatpush1.bf16.msra.mxu0 0
        %433 = vmatprep.subr.bf16.mxu0 0
        %434 = vmatpush1.bf16.msra.mxu0 %v369
        %435 = vmatprep.subr.bf16.mxu0 0
        %436 = vmatpush1.bf16.msra.mxu0 %v368
        %437 = vmatprep.subr.bf16.mxu0 0
        %438 = vmatpush2.bf16.msra.mxu0 0
        %439 = vmatprep.subr.bf16.mxu0 0
        %440 = vmatpush2.bf16.msra.mxu0 0
        %441 = vmatprep.subr.bf16.mxu0 0
        %442 = vmatpush2.bf16.msra.mxu0 0
        %443 = vmatprep.subr.bf16.mxu0 0
        %444 = vmatpush2.bf16.msra.mxu0 0
        %445 = vmatprep.subr.bf16.mxu0 0
        %446 = vmatpush2.bf16.msra.mxu0 0
        %447 = vmatprep.subr.bf16.mxu0 0
        %448 = vmatpush2.bf16.msra.mxu0 0
        %449 = vmatprep.subr.bf16.mxu0 0
        %450 = vmatpush2.bf16.msra.mxu0 0
        %451 = vmatprep.subr.bf16.mxu0 0
        %452 = vmatpush2.bf16.msra.mxu0 0
        %453 = vmatprep.mubr.bf16.mxu0 0
        %454 = vmatmul.mubr.bf16.gmra.mxu0 %v374
        %v455 = vpop.f32.mrf.mxu0
        %v456 = vadd.f32 %v358, %v455
        %v457 = vpop.f32.mrf.mxu0
        %v458 = vpop.f32.mrf.mxu0
        %v459 = vadd.f32 %v358, %v458
        %v460 = vpop.f32.mrf.mxu0
        %461 = vmatprep.mubr.bf16.mxu0 0
        %462 = vmatmul.mubr.bf16.gmra.mxu0 %v377
        %v463 = vpop.f32.mrf.mxu0
        %v464 = vadd.f32 %v358, %v463
        %v465 = vpop.f32.mrf.mxu0
        %v466 = vpop.f32.mrf.mxu0
        %v467 = vadd.f32 %v358, %v466
        %v468 = vpop.f32.mrf.mxu0
        %469 = vmatprep.mubr.bf16.mxu0 0
        %470 = vmatmul.mubr.bf16.gmra.mxu0 %v380
        %v471 = vpop.f32.mrf.mxu0
        %v472 = vadd.f32 %v358, %v471
        %v473 = vpop.f32.mrf.mxu0
        %v474 = vpop.f32.mrf.mxu0
        %v475 = vadd.f32 %v358, %v474
        %v476 = vpop.f32.mrf.mxu0
        %477 = vmatprep.mubr.bf16.mxu0 0
        %478 = vmatmul.mubr.bf16.gmra.mxu0 %v383
        %v479 = vpop.f32.mrf.mxu0
        %v480 = vadd.f32 %v358, %v479
        %v481 = vpop.f32.mrf.mxu0
        %v482 = vpop.f32.mrf.mxu0
        %v483 = vadd.f32 %v358, %v482
        %v484 = vpop.f32.mrf.mxu0
        %485 = vmatprep.mubr.bf16.mxu0 0
        %486 = vmatmul.mubr.bf16.gmra.mxu0 %v386
        %v487 = vpop.f32.mrf.mxu0
        %v488 = vadd.f32 %v358, %v487
        %v489 = vpop.f32.mrf.mxu0
        %v490 = vpop.f32.mrf.mxu0
        %v491 = vadd.f32 %v358, %v490
        %v492 = vpop.f32.mrf.mxu0
        %493 = vmatprep.mubr.bf16.mxu0 0
        %494 = vmatmul.mubr.bf16.gmra.mxu0 %v389
        %v495 = vpop.f32.mrf.mxu0
        %v496 = vadd.f32 %v358, %v495
        %v497 = vpop.f32.mrf.mxu0
        %v498 = vpop.f32.mrf.mxu0
        %v499 = vadd.f32 %v358, %v498
        %v500 = vpop.f32.mrf.mxu0
        %501 = vmatprep.mubr.bf16.mxu0 0
        %502 = vmatmul.mubr.bf16.gmra.mxu0 %v392
        %v503 = vpop.f32.mrf.mxu0
        %v504 = vadd.f32 %v358, %v503
        %v505 = vpop.f32.mrf.mxu0
        %v506 = vpop.f32.mrf.mxu0
        %v507 = vadd.f32 %v358, %v506
        %v508 = vpop.f32.mrf.mxu0
        %509 = vmatprep.mubr.bf16.mxu0 0
        %510 = vmatmul.mubr.bf16.gmra.mxu0 %v395
        %v511 = vpop.f32.mrf.mxu0
        %v512 = vadd.f32 %v358, %v511
        %v513 = vpop.f32.mrf.mxu0
        %v514 = vpop.f32.mrf.mxu0
        %v515 = vadd.f32 %v358, %v514
        %v516 = vpop.f32.mrf.mxu0
        %517 = vmatprep.mubr.bf16.mxu0 0
        %518 = vmatmul.mubr.bf16.gmra.mxu0 %v398
        %v519 = vpop.f32.mrf.mxu0
        %v520 = vadd.f32 %v358, %v519
        %v521 = vpop.f32.mrf.mxu0
        %v522 = vpop.f32.mrf.mxu0
        %v523 = vadd.f32 %v358, %v522
        %v524 = vpop.f32.mrf.mxu0
        %525 = vmatprep.mubr.bf16.mxu0 0
        %526 = vmatmul.mubr.bf16.gmra.mxu0 %v401
        %v527 = vpop.f32.mrf.mxu0
        %v528 = vadd.f32 %v358, %v527
        %v529 = vpop.f32.mrf.mxu0
        %v530 = vpop.f32.mrf.mxu0
        %v531 = vadd.f32 %v358, %v530
        %v532 = vpop.f32.mrf.mxu0
        %533 = vmatprep.mubr.bf16.mxu0 0
        %534 = vmatmul.mubr.bf16.gmra.mxu0 %v404
        %v535 = vpop.f32.mrf.mxu0
        %v536 = vadd.f32 %v358, %v535
        %v537 = vpop.f32.mrf.mxu0
        %v538 = vpop.f32.mrf.mxu0
        %v539 = vadd.f32 %v358, %v538
        %v540 = vpop.f32.mrf.mxu0
        %541 = vmatprep.mubr.bf16.mxu0 0
        %542 = vmatmul.mubr.bf16.gmra.mxu0 %v407
        %v543 = vpop.f32.mrf.mxu0
        %v544 = vadd.f32 %v358, %v543
        %v545 = vpop.f32.mrf.mxu0
        %v546 = vpop.f32.mrf.mxu0
        %v547 = vadd.f32 %v358, %v546
        %v548 = vpop.f32.mrf.mxu0
        %549 = vmatprep.mubr.bf16.mxu0 0
        %550 = vmatmul.mubr.bf16.gmra.mxu0 %v410
        %v551 = vpop.f32.mrf.mxu0
        %v552 = vadd.f32 %v358, %v551
        %v553 = vpop.f32.mrf.mxu0
        %v554 = vpop.f32.mrf.mxu0
        %v555 = vadd.f32 %v358, %v554
        %v556 = vpop.f32.mrf.mxu0
        %557 = vmatprep.mubr.bf16.mxu0 0
        %558 = vmatmul.mubr.bf16.gmra.mxu0 %v413
        %v559 = vpop.f32.mrf.mxu0
        %v560 = vadd.f32 %v358, %v559
        %v561 = vpop.f32.mrf.mxu0
        %v562 = vpop.f32.mrf.mxu0
        %v563 = vadd.f32 %v358, %v562
        %v564 = vpop.f32.mrf.mxu0
        %565 = vmatprep.mubr.bf16.mxu0 0
        %566 = vmatmul.mubr.bf16.gmra.mxu0 %v416
        %v567 = vpop.f32.mrf.mxu0
        %v568 = vadd.f32 %v358, %v567
        %v569 = vpop.f32.mrf.mxu0
        %v570 = vpop.f32.mrf.mxu0
        %v571 = vadd.f32 %v358, %v570
        %v572 = vpop.f32.mrf.mxu0
        %573 = vmatprep.mubr.bf16.mxu0 0
        %574 = vmatmul.mubr.bf16.gmra.mxu0 %v419
        %v575 = vpop.f32.mrf.mxu0
        %v576 = vadd.f32 %v358, %v575
        %v577 = vpop.f32.mrf.mxu0
        %v578 = vpop.f32.mrf.mxu0
        %v579 = vadd.f32 %v358, %v578
        %v580 = vpop.f32.mrf.mxu0
        %581 = vdwg.mxu0
        %v582 = vmax.f32 %v456, 0.0
        %v583 = vmax.f32 %v459, 0.0
        %v584 = vmax.f32 %v464, 0.0
        %v585 = vmax.f32 %v467, 0.0
        %v586 = vmax.f32 %v472, 0.0
        %v587 = vmax.f32 %v475, 0.0
        %v588 = vmax.f32 %v480, 0.0
        %v589 = vmax.f32 %v483, 0.0
        %v590 = vmax.f32 %v488, 0.0
        %v591 = vmax.f32 %v491, 0.0
        %v592 = vmax.f32 %v496, 0.0
        %v593 = vmax.f32 %v499, 0.0
        %v594 = vmax.f32 %v504, 0.0
        %v595 = vmax.f32 %v507, 0.0
        %v596 = vmax.f32 %v512, 0.0
        %v597 = vmax.f32 %v515, 0.0
        %v598 = vmax.f32 %v520, 0.0
        %v599 = vmax.f32 %v523, 0.0
        %v600 = vmax.f32 %v528, 0.0
        %v601 = vmax.f32 %v531, 0.0
        %v602 = vmax.f32 %v536, 0.0
        %v603 = vmax.f32 %v539, 0.0
        %v604 = vmax.f32 %v544, 0.0
        %v605 = vmax.f32 %v547, 0.0
        %v606 = vmax.f32 %v552, 0.0
        %v607 = vmax.f32 %v555, 0.0
        %v608 = vmax.f32 %v560, 0.0
        %v609 = vmax.f32 %v563, 0.0
        %v610 = vmax.f32 %v568, 0.0
        %v611 = vmax.f32 %v571, 0.0
        %v612 = vmax.f32 %v576, 0.0
        %v613 = vmax.f32 %v579, 0.0
        %v614 = vpack.c.bf16 %v583, %v582
        %v615 = vpack.c.bf16 %v585, %v584
        %v616 = vpack.c.bf16 %v587, %v586
        %v617 = vpack.c.bf16 %v589, %v588
        %v618 = vpack.c.bf16 %v591, %v590
        %v619 = vpack.c.bf16 %v593, %v592
        %v620 = vpack.c.bf16 %v595, %v594
        %v621 = vpack.c.bf16 %v597, %v596
        %v622 = vpack.c.bf16 %v599, %v598
        %v623 = vpack.c.bf16 %v601, %v600
        %v624 = vpack.c.bf16 %v603, %v602
        %v625 = vpack.c.bf16 %v605, %v604
        %v626 = vpack.c.bf16 %v607, %v606
        %v627 = vpack.c.bf16 %v609, %v608
        %v628 = vpack.c.bf16 %v611, %v610
        %v629 = vpack.c.bf16 %v613, %v612
        %v630 = vld [vmem:[%s3] sm:$0xf]
        %v631 = vld [vmem:[%s3 + $0x4] sm:$0xf]
        %v632 = vld [vmem:[%s3 + $0x8] sm:$0xf]
        %v633 = vld [vmem:[%s3 + $0xc] sm:$0xf]
        %v634 = vld [vmem:[%s3 + $0x10] sm:$0xf]
        %v635 = vld [vmem:[%s3 + $0x14] sm:$0xf]
        %v636 = vld [vmem:[%s3 + $0x18] sm:$0xf]
        %v637 = vld [vmem:[%s3 + $0x1c] sm:$0xf]
        %v638 = vld [vmem:[%s4] sm:$0x1]
        %v640 = vlaneseq
        %v641 = vshrl.u32 %v640, 7
        %v642 = vsub.s32 0, %v641
        %v643 = vrot.slane %v638, %v642
        %v653 = vunpack.c.l.b16 %v630
        %v654 = vunpack.c.l.b16 %v631
        %v655 = vunpack.c.l.b16 %v632
        %v656 = vunpack.c.l.b16 %v633
        %v657 = vunpack.c.l.b16 %v634
        %v658 = vunpack.c.l.b16 %v635
        %v659 = vunpack.c.l.b16 %v636
        %v660 = vunpack.c.l.b16 %v637
        %v661 = vpack.c.b16 %v654, %v653
        %v662 = vpack.c.b16 %v656, %v655
        %v663 = vpack.c.b16 %v658, %v657
        %v664 = vpack.c.b16 %v660, %v659
        %vm669 = vcmask 523264
        %v671 = vsel %vm669, %v614, 0
        %v674 = vsel %vm669, %v615, 0
        %v677 = vsel %vm669, %v616, 0
        %v680 = vsel %vm669, %v617, 0
        %v683 = vsel %vm669, %v618, 0
        %v686 = vsel %vm669, %v619, 0
        %v689 = vsel %vm669, %v620, 0
        %v692 = vsel %vm669, %v621, 0
        %v695 = vsel %vm669, %v622, 0
        %v698 = vsel %vm669, %v623, 0
        %v701 = vsel %vm669, %v624, 0
        %v704 = vsel %vm669, %v625, 0
        %v707 = vsel %vm669, %v626, 0
        %v710 = vsel %vm669, %v627, 0
        %v713 = vsel %vm669, %v628, 0
        %v716 = vsel %vm669, %v629, 0
        %718 = vmatprep.subr.bf16.mxu0 0
        %719 = vmatpush1.bf16.msra.mxu0 0
        %720 = vmatprep.subr.bf16.mxu0 0
        %721 = vmatpush1.bf16.msra.mxu0 0
        %722 = vmatprep.subr.bf16.mxu0 0
        %723 = vmatpush1.bf16.msra.mxu0 0
        %724 = vmatprep.subr.bf16.mxu0 0
        %725 = vmatpush1.bf16.msra.mxu0 0
        %726 = vmatprep.subr.bf16.mxu0 0
        %727 = vmatpush1.bf16.msra.mxu0 %v664
        %728 = vmatprep.subr.bf16.mxu0 0
        %729 = vmatpush1.bf16.msra.mxu0 %v663
        %730 = vmatprep.subr.bf16.mxu0 0
        %731 = vmatpush1.bf16.msra.mxu0 %v662
        %732 = vmatprep.subr.bf16.mxu0 0
        %733 = vmatpush1.bf16.msra.mxu0 %v661
        %734 = vmatprep.subr.bf16.mxu0 0
        %735 = vmatpush2.bf16.msra.mxu0 0
        %736 = vmatprep.subr.bf16.mxu0 0
        %737 = vmatpush2.bf16.msra.mxu0 0
        %738 = vmatprep.subr.bf16.mxu0 0
        %739 = vmatpush2.bf16.msra.mxu0 0
        %740 = vmatprep.subr.bf16.mxu0 0
        %741 = vmatpush2.bf16.msra.mxu0 0
        %742 = vmatprep.subr.bf16.mxu0 0
        %743 = vmatpush2.bf16.msra.mxu0 0
        %744 = vmatprep.subr.bf16.mxu0 0
        %745 = vmatpush2.bf16.msra.mxu0 0
        %746 = vmatprep.subr.bf16.mxu0 0
        %747 = vmatpush2.bf16.msra.mxu0 0
        %748 = vmatprep.subr.bf16.mxu0 0
        %749 = vmatpush2.bf16.msra.mxu0 0
        %750 = vmatprep.mubr.bf16.mxu0 0
        %751 = vmatmul.mubr.bf16.gmra.mxu0 %v671
        %v752 = vpop.f32.mrf.mxu0
        %v753 = vadd.f32 %v643, %v752
        %v754 = vpop.f32.mrf.mxu0
        %v755 = vpop.f32.mrf.mxu0
        %v756 = vadd.f32 %v643, %v755
        %v757 = vpop.f32.mrf.mxu0
        %758 = vmatprep.mubr.bf16.mxu0 0
        %759 = vmatmul.mubr.bf16.gmra.mxu0 %v674
        %v760 = vpop.f32.mrf.mxu0
        %v761 = vadd.f32 %v643, %v760
        %v762 = vpop.f32.mrf.mxu0
        %v763 = vpop.f32.mrf.mxu0
        %v764 = vadd.f32 %v643, %v763
        %v765 = vpop.f32.mrf.mxu0
        %766 = vmatprep.mubr.bf16.mxu0 0
        %767 = vmatmul.mubr.bf16.gmra.mxu0 %v677
        %v768 = vpop.f32.mrf.mxu0
        %v769 = vadd.f32 %v643, %v768
        %v770 = vpop.f32.mrf.mxu0
        %v771 = vpop.f32.mrf.mxu0
        %v772 = vadd.f32 %v643, %v771
        %v773 = vpop.f32.mrf.mxu0
        %774 = vmatprep.mubr.bf16.mxu0 0
        %775 = vmatmul.mubr.bf16.gmra.mxu0 %v680
        %v776 = vpop.f32.mrf.mxu0
        %v777 = vadd.f32 %v643, %v776
        %v778 = vpop.f32.mrf.mxu0
        %v779 = vpop.f32.mrf.mxu0
        %v780 = vadd.f32 %v643, %v779
        %v781 = vpop.f32.mrf.mxu0
        %782 = vmatprep.mubr.bf16.mxu0 0
        %783 = vmatmul.mubr.bf16.gmra.mxu0 %v683
        %v784 = vpop.f32.mrf.mxu0
        %v785 = vadd.f32 %v643, %v784
        %v786 = vpop.f32.mrf.mxu0
        %v787 = vpop.f32.mrf.mxu0
        %v788 = vadd.f32 %v643, %v787
        %v789 = vpop.f32.mrf.mxu0
        %790 = vmatprep.mubr.bf16.mxu0 0
        %791 = vmatmul.mubr.bf16.gmra.mxu0 %v686
        %v792 = vpop.f32.mrf.mxu0
        %v793 = vadd.f32 %v643, %v792
        %v794 = vpop.f32.mrf.mxu0
        %v795 = vpop.f32.mrf.mxu0
        %v796 = vadd.f32 %v643, %v795
        %v797 = vpop.f32.mrf.mxu0
        %798 = vmatprep.mubr.bf16.mxu0 0
        %799 = vmatmul.mubr.bf16.gmra.mxu0 %v689
        %v800 = vpop.f32.mrf.mxu0
        %v801 = vadd.f32 %v643, %v800
        %v802 = vpop.f32.mrf.mxu0
        %v803 = vpop.f32.mrf.mxu0
        %v804 = vadd.f32 %v643, %v803
        %v805 = vpop.f32.mrf.mxu0
        %806 = vmatprep.mubr.bf16.mxu0 0
        %807 = vmatmul.mubr.bf16.gmra.mxu0 %v692
        %v808 = vpop.f32.mrf.mxu0
        %v809 = vadd.f32 %v643, %v808
        %v810 = vpop.f32.mrf.mxu0
        %v811 = vpop.f32.mrf.mxu0
        %v812 = vadd.f32 %v643, %v811
        %v813 = vpop.f32.mrf.mxu0
        %814 = vmatprep.mubr.bf16.mxu0 0
        %815 = vmatmul.mubr.bf16.gmra.mxu0 %v695
        %v816 = vpop.f32.mrf.mxu0
        %v817 = vadd.f32 %v643, %v816
        %v818 = vpop.f32.mrf.mxu0
        %v819 = vpop.f32.mrf.mxu0
        %v820 = vadd.f32 %v643, %v819
        %v821 = vpop.f32.mrf.mxu0
        %822 = vmatprep.mubr.bf16.mxu0 0
        %823 = vmatmul.mubr.bf16.gmra.mxu0 %v698
        %v824 = vpop.f32.mrf.mxu0
        %v825 = vadd.f32 %v643, %v824
        %v826 = vpop.f32.mrf.mxu0
        %v827 = vpop.f32.mrf.mxu0
        %v828 = vadd.f32 %v643, %v827
        %v829 = vpop.f32.mrf.mxu0
        %830 = vmatprep.mubr.bf16.mxu0 0
        %831 = vmatmul.mubr.bf16.gmra.mxu0 %v701
        %v832 = vpop.f32.mrf.mxu0
        %v833 = vadd.f32 %v643, %v832
        %v834 = vpop.f32.mrf.mxu0
        %v835 = vpop.f32.mrf.mxu0
        %v836 = vadd.f32 %v643, %v835
        %v837 = vpop.f32.mrf.mxu0
        %838 = vmatprep.mubr.bf16.mxu0 0
        %839 = vmatmul.mubr.bf16.gmra.mxu0 %v704
        %v840 = vpop.f32.mrf.mxu0
        %v841 = vadd.f32 %v643, %v840
        %v842 = vpop.f32.mrf.mxu0
        %v843 = vpop.f32.mrf.mxu0
        %v844 = vadd.f32 %v643, %v843
        %v845 = vpop.f32.mrf.mxu0
        %846 = vmatprep.mubr.bf16.mxu0 0
        %847 = vmatmul.mubr.bf16.gmra.mxu0 %v707
        %v848 = vpop.f32.mrf.mxu0
        %v849 = vadd.f32 %v643, %v848
        %v850 = vpop.f32.mrf.mxu0
        %v851 = vpop.f32.mrf.mxu0
        %v852 = vadd.f32 %v643, %v851
        %v853 = vpop.f32.mrf.mxu0
        %854 = vmatprep.mubr.bf16.mxu0 0
        %855 = vmatmul.mubr.bf16.gmra.mxu0 %v710
        %v856 = vpop.f32.mrf.mxu0
        %v857 = vadd.f32 %v643, %v856
        %v858 = vpop.f32.mrf.mxu0
        %v859 = vpop.f32.mrf.mxu0
        %v860 = vadd.f32 %v643, %v859
        %v861 = vpop.f32.mrf.mxu0
        %862 = vmatprep.mubr.bf16.mxu0 0
        %863 = vmatmul.mubr.bf16.gmra.mxu0 %v713
        %v864 = vpop.f32.mrf.mxu0
        %v865 = vadd.f32 %v643, %v864
        %v866 = vpop.f32.mrf.mxu0
        %v867 = vpop.f32.mrf.mxu0
        %v868 = vadd.f32 %v643, %v867
        %v869 = vpop.f32.mrf.mxu0
        %870 = vmatprep.mubr.bf16.mxu0 0
        %871 = vmatmul.mubr.bf16.gmra.mxu0 %v716
        %v872 = vpop.f32.mrf.mxu0
        %v873 = vadd.f32 %v643, %v872
        %v874 = vpop.f32.mrf.mxu0
        %v875 = vpop.f32.mrf.mxu0
        %v876 = vadd.f32 %v643, %v875
        %v877 = vpop.f32.mrf.mxu0
        %878 = vdwg.mxu0
        %v879 = vmax.f32 %v753, 0.0
        %v880 = vmax.f32 %v756, 0.0
        %v881 = vmax.f32 %v761, 0.0
        %v882 = vmax.f32 %v764, 0.0
        %v883 = vmax.f32 %v769, 0.0
        %v884 = vmax.f32 %v772, 0.0
        %v885 = vmax.f32 %v777, 0.0
        %v886 = vmax.f32 %v780, 0.0
        %v887 = vmax.f32 %v785, 0.0
        %v888 = vmax.f32 %v788, 0.0
        %v889 = vmax.f32 %v793, 0.0
        %v890 = vmax.f32 %v796, 0.0
        %v891 = vmax.f32 %v801, 0.0
        %v892 = vmax.f32 %v804, 0.0
        %v893 = vmax.f32 %v809, 0.0
        %v894 = vmax.f32 %v812, 0.0
        %v895 = vmax.f32 %v817, 0.0
        %v896 = vmax.f32 %v820, 0.0
        %v897 = vmax.f32 %v825, 0.0
        %v898 = vmax.f32 %v828, 0.0
        %v899 = vmax.f32 %v833, 0.0
        %v900 = vmax.f32 %v836, 0.0
        %v901 = vmax.f32 %v841, 0.0
        %v902 = vmax.f32 %v844, 0.0
        %v903 = vmax.f32 %v849, 0.0
        %v904 = vmax.f32 %v852, 0.0
        %v905 = vmax.f32 %v857, 0.0
        %v906 = vmax.f32 %v860, 0.0
        %v907 = vmax.f32 %v865, 0.0
        %v908 = vmax.f32 %v868, 0.0
        %v909 = vmax.f32 %v873, 0.0
        %v910 = vmax.f32 %v876, 0.0
        %v911 = vpack.c.bf16 %v880, %v879
        %v912 = vpack.c.bf16 %v882, %v881
        %v913 = vpack.c.bf16 %v884, %v883
        %v914 = vpack.c.bf16 %v886, %v885
        %v915 = vpack.c.bf16 %v888, %v887
        %v916 = vpack.c.bf16 %v890, %v889
        %v917 = vpack.c.bf16 %v892, %v891
        %v918 = vpack.c.bf16 %v894, %v893
        %v919 = vpack.c.bf16 %v896, %v895
        %v920 = vpack.c.bf16 %v898, %v897
        %v921 = vpack.c.bf16 %v900, %v899
        %v922 = vpack.c.bf16 %v902, %v901
        %v923 = vpack.c.bf16 %v904, %v903
        %v924 = vpack.c.bf16 %v906, %v905
        %v925 = vpack.c.bf16 %v908, %v907
        %v926 = vpack.c.bf16 %v910, %v909
        %v927 = vld [vmem:[%s5] sm:$0xf]
        %v928 = vld [vmem:[%s5 + $0x4] sm:$0xf]
        %v929 = vld [vmem:[%s5 + $0x8] sm:$0xf]
        %v930 = vld [vmem:[%s5 + $0xc] sm:$0xf]
        %v931 = vld [vmem:[%s6] sm:$0x1]
        %v933 = vlaneseq
        %v934 = vshrl.u32 %v933, 7
        %v935 = vsub.s32 0, %v934
        %v936 = vrot.slane %v931, %v935
        %v942 = vunpack.c.l.b16 %v927
        %v943 = vunpack.c.l.b16 %v928
        %v944 = vunpack.c.l.b16 %v929
        %v945 = vunpack.c.l.b16 %v930
        %v946 = vpack.c.b16 %v943, %v942
        %v947 = vpack.c.b16 %v945, %v944
        %v951 = vsel %vm372, %v911, 0
        %v954 = vsel %vm372, %v912, 0
        %v957 = vsel %vm372, %v913, 0
        %v960 = vsel %vm372, %v914, 0
        %v963 = vsel %vm372, %v915, 0
        %v966 = vsel %vm372, %v916, 0
        %v969 = vsel %vm372, %v917, 0
        %v972 = vsel %vm372, %v918, 0
        %v975 = vsel %vm372, %v919, 0
        %v978 = vsel %vm372, %v920, 0
        %v981 = vsel %vm372, %v921, 0
        %v984 = vsel %vm372, %v922, 0
        %v987 = vsel %vm372, %v923, 0
        %v990 = vsel %vm372, %v924, 0
        %v993 = vsel %vm372, %v925, 0
        %v996 = vsel %vm372, %v926, 0
        %998 = vmatprep.subr.bf16.mxu0 0
        %999 = vmatpush1.bf16.msra.mxu0 0
        %1000 = vmatprep.subr.bf16.mxu0 0
        %1001 = vmatpush1.bf16.msra.mxu0 0
        %1002 = vmatprep.subr.bf16.mxu0 0
        %1003 = vmatpush1.bf16.msra.mxu0 0
        %1004 = vmatprep.subr.bf16.mxu0 0
        %1005 = vmatpush1.bf16.msra.mxu0 0
        %1006 = vmatprep.subr.bf16.mxu0 0
        %1007 = vmatpush1.bf16.msra.mxu0 0
        %1008 = vmatprep.subr.bf16.mxu0 0
        %1009 = vmatpush1.bf16.msra.mxu0 0
        %1010 = vmatprep.subr.bf16.mxu0 0
        %1011 = vmatpush1.bf16.msra.mxu0 %v947
        %1012 = vmatprep.subr.bf16.mxu0 0
        %1013 = vmatpush1.bf16.msra.mxu0 %v946
        %1014 = vmatprep.subr.bf16.mxu0 0
        %1015 = vmatpush2.bf16.msra.mxu0 0
        %1016 = vmatprep.subr.bf16.mxu0 0
        %1017 = vmatpush2.bf16.msra.mxu0 0
        %1018 = vmatprep.subr.bf16.mxu0 0
        %1019 = vmatpush2.bf16.msra.mxu0 0
        %1020 = vmatprep.subr.bf16.mxu0 0
        %1021 = vmatpush2.bf16.msra.mxu0 0
        %1022 = vmatprep.subr.bf16.mxu0 0
        %1023 = vmatpush2.bf16.msra.mxu0 0
        %1024 = vmatprep.subr.bf16.mxu0 0
        %1025 = vmatpush2.bf16.msra.mxu0 0
        %1026 = vmatprep.subr.bf16.mxu0 0
        %1027 = vmatpush2.bf16.msra.mxu0 0
        %1028 = vmatprep.subr.bf16.mxu0 0
        %1029 = vmatpush2.bf16.msra.mxu0 0
        %1030 = vmatprep.mubr.bf16.mxu0 0
        %1031 = vmatmul.mubr.bf16.gmra.mxu0 %v951
        %v1032 = vpop.f32.mrf.mxu0
        %v1033 = vadd.f32 %v936, %v1032
        %v1034 = vpop.f32.mrf.mxu0
        %v1035 = vpop.f32.mrf.mxu0
        %v1036 = vadd.f32 %v936, %v1035
        %v1037 = vpop.f32.mrf.mxu0
        %1038 = vmatprep.mubr.bf16.mxu0 0
        %1039 = vmatmul.mubr.bf16.gmra.mxu0 %v954
        %v1040 = vpop.f32.mrf.mxu0
        %v1041 = vadd.f32 %v936, %v1040
        %v1042 = vpop.f32.mrf.mxu0
        %v1043 = vpop.f32.mrf.mxu0
        %v1044 = vadd.f32 %v936, %v1043
        %v1045 = vpop.f32.mrf.mxu0
        %1046 = vmatprep.mubr.bf16.mxu0 0
        %1047 = vmatmul.mubr.bf16.gmra.mxu0 %v957
        %v1048 = vpop.f32.mrf.mxu0
        %v1049 = vadd.f32 %v936, %v1048
        %v1050 = vpop.f32.mrf.mxu0
        %v1051 = vpop.f32.mrf.mxu0
        %v1052 = vadd.f32 %v936, %v1051
        %v1053 = vpop.f32.mrf.mxu0
        %1054 = vmatprep.mubr.bf16.mxu0 0
        %1055 = vmatmul.mubr.bf16.gmra.mxu0 %v960
        %v1056 = vpop.f32.mrf.mxu0
        %v1057 = vadd.f32 %v936, %v1056
        %v1058 = vpop.f32.mrf.mxu0
        %v1059 = vpop.f32.mrf.mxu0
        %v1060 = vadd.f32 %v936, %v1059
        %v1061 = vpop.f32.mrf.mxu0
        %1062 = vmatprep.mubr.bf16.mxu0 0
        %1063 = vmatmul.mubr.bf16.gmra.mxu0 %v963
        %v1064 = vpop.f32.mrf.mxu0
        %v1065 = vadd.f32 %v936, %v1064
        %v1066 = vpop.f32.mrf.mxu0
        %v1067 = vpop.f32.mrf.mxu0
        %v1068 = vadd.f32 %v936, %v1067
        %v1069 = vpop.f32.mrf.mxu0
        %1070 = vmatprep.mubr.bf16.mxu0 0
        %1071 = vmatmul.mubr.bf16.gmra.mxu0 %v966
        %v1072 = vpop.f32.mrf.mxu0
        %v1073 = vadd.f32 %v936, %v1072
        %v1074 = vpop.f32.mrf.mxu0
        %v1075 = vpop.f32.mrf.mxu0
        %v1076 = vadd.f32 %v936, %v1075
        %v1077 = vpop.f32.mrf.mxu0
        %1078 = vmatprep.mubr.bf16.mxu0 0
        %1079 = vmatmul.mubr.bf16.gmra.mxu0 %v969
        %v1080 = vpop.f32.mrf.mxu0
        %v1081 = vadd.f32 %v936, %v1080
        %v1082 = vpop.f32.mrf.mxu0
        %v1083 = vpop.f32.mrf.mxu0
        %v1084 = vadd.f32 %v936, %v1083
        %v1085 = vpop.f32.mrf.mxu0
        %1086 = vmatprep.mubr.bf16.mxu0 0
        %1087 = vmatmul.mubr.bf16.gmra.mxu0 %v972
        %v1088 = vpop.f32.mrf.mxu0
        %v1089 = vadd.f32 %v936, %v1088
        %v1090 = vpop.f32.mrf.mxu0
        %v1091 = vpop.f32.mrf.mxu0
        %v1092 = vadd.f32 %v936, %v1091
        %v1093 = vpop.f32.mrf.mxu0
        %1094 = vmatprep.mubr.bf16.mxu0 0
        %1095 = vmatmul.mubr.bf16.gmra.mxu0 %v975
        %v1096 = vpop.f32.mrf.mxu0
        %v1097 = vadd.f32 %v936, %v1096
        %v1098 = vpop.f32.mrf.mxu0
        %v1099 = vpop.f32.mrf.mxu0
        %v1100 = vadd.f32 %v936, %v1099
        %v1101 = vpop.f32.mrf.mxu0
        %1102 = vmatprep.mubr.bf16.mxu0 0
        %1103 = vmatmul.mubr.bf16.gmra.mxu0 %v978
        %v1104 = vpop.f32.mrf.mxu0
        %v1105 = vadd.f32 %v936, %v1104
        %v1106 = vpop.f32.mrf.mxu0
        %v1107 = vpop.f32.mrf.mxu0
        %v1108 = vadd.f32 %v936, %v1107
        %v1109 = vpop.f32.mrf.mxu0
        %1110 = vmatprep.mubr.bf16.mxu0 0
        %1111 = vmatmul.mubr.bf16.gmra.mxu0 %v981
        %v1112 = vpop.f32.mrf.mxu0
        %v1113 = vadd.f32 %v936, %v1112
        %v1114 = vpop.f32.mrf.mxu0
        %v1115 = vpop.f32.mrf.mxu0
        %v1116 = vadd.f32 %v936, %v1115
        %v1117 = vpop.f32.mrf.mxu0
        %1118 = vmatprep.mubr.bf16.mxu0 0
        %1119 = vmatmul.mubr.bf16.gmra.mxu0 %v984
        %v1120 = vpop.f32.mrf.mxu0
        %v1121 = vadd.f32 %v936, %v1120
        %v1122 = vpop.f32.mrf.mxu0
        %v1123 = vpop.f32.mrf.mxu0
        %v1124 = vadd.f32 %v936, %v1123
        %v1125 = vpop.f32.mrf.mxu0
        %1126 = vmatprep.mubr.bf16.mxu0 0
        %1127 = vmatmul.mubr.bf16.gmra.mxu0 %v987
        %v1128 = vpop.f32.mrf.mxu0
        %v1129 = vadd.f32 %v936, %v1128
        %v1130 = vpop.f32.mrf.mxu0
        %v1131 = vpop.f32.mrf.mxu0
        %v1132 = vadd.f32 %v936, %v1131
        %v1133 = vpop.f32.mrf.mxu0
        %1134 = vmatprep.mubr.bf16.mxu0 0
        %1135 = vmatmul.mubr.bf16.gmra.mxu0 %v990
        %v1136 = vpop.f32.mrf.mxu0
        %v1137 = vadd.f32 %v936, %v1136
        %v1138 = vpop.f32.mrf.mxu0
        %v1139 = vpop.f32.mrf.mxu0
        %v1140 = vadd.f32 %v936, %v1139
        %v1141 = vpop.f32.mrf.mxu0
        %1142 = vmatprep.mubr.bf16.mxu0 0
        %1143 = vmatmul.mubr.bf16.gmra.mxu0 %v993
        %v1144 = vpop.f32.mrf.mxu0
        %v1145 = vadd.f32 %v936, %v1144
        %v1146 = vpop.f32.mrf.mxu0
        %v1147 = vpop.f32.mrf.mxu0
        %v1148 = vadd.f32 %v936, %v1147
        %v1149 = vpop.f32.mrf.mxu0
        %1150 = vmatprep.mubr.bf16.mxu0 0
        %1151 = vmatmul.mubr.bf16.gmra.mxu0 %v996
        %v1152 = vpop.f32.mrf.mxu0
        %v1153 = vadd.f32 %v936, %v1152
        %v1154 = vpop.f32.mrf.mxu0
        %v1155 = vpop.f32.mrf.mxu0
        %v1156 = vadd.f32 %v936, %v1155
        %v1157 = vpop.f32.mrf.mxu0
        %1158 = vdwg.mxu0
        %v1159 = vpack.c.bf16 %v1036, %v1033
        %v1160 = vpack.c.bf16 %v1044, %v1041
        %v1161 = vpack.c.bf16 %v1052, %v1049
        %v1162 = vpack.c.bf16 %v1060, %v1057
        %v1163 = vpack.c.bf16 %v1068, %v1065
        %v1164 = vpack.c.bf16 %v1076, %v1073
        %v1165 = vpack.c.bf16 %v1084, %v1081
        %v1166 = vpack.c.bf16 %v1092, %v1089
        %v1167 = vpack.c.bf16 %v1100, %v1097
        %v1168 = vpack.c.bf16 %v1108, %v1105
        %v1169 = vpack.c.bf16 %v1116, %v1113
        %v1170 = vpack.c.bf16 %v1124, %v1121
        %v1171 = vpack.c.bf16 %v1132, %v1129
        %v1172 = vpack.c.bf16 %v1140, %v1137
        %v1173 = vpack.c.bf16 %v1148, %v1145
        %v1174 = vpack.c.bf16 %v1156, %v1153
        %v1191 = vunpack.c.l.b16 %v1159
        %v1192 = vunpack.c.h.b16 %v1159
        %v1193 = vunpack.c.l.b16 %v1160
        %v1194 = vunpack.c.h.b16 %v1160
        %v1195 = vunpack.c.l.b16 %v1161
        %v1196 = vunpack.c.h.b16 %v1161
        %v1197 = vunpack.c.l.b16 %v1162
        %v1198 = vunpack.c.h.b16 %v1162
        %v1199 = vunpack.c.l.b16 %v1163
        %v1200 = vunpack.c.h.b16 %v1163
        %v1201 = vunpack.c.l.b16 %v1164
        %v1202 = vunpack.c.h.b16 %v1164
        %v1203 = vunpack.c.l.b16 %v1165
        %v1204 = vunpack.c.h.b16 %v1165
        %v1205 = vunpack.c.l.b16 %v1166
        %v1206 = vunpack.c.h.b16 %v1166
        %v1207 = vunpack.c.l.b16 %v1167
        %v1208 = vunpack.c.h.b16 %v1167
        %v1209 = vunpack.c.l.b16 %v1168
        %v1210 = vunpack.c.h.b16 %v1168
        %v1211 = vunpack.c.l.b16 %v1169
        %v1212 = vunpack.c.h.b16 %v1169
        %v1213 = vunpack.c.l.b16 %v1170
        %v1214 = vunpack.c.h.b16 %v1170
        %v1215 = vunpack.c.l.b16 %v1171
        %v1216 = vunpack.c.h.b16 %v1171
        %v1217 = vunpack.c.l.b16 %v1172
        %v1218 = vunpack.c.h.b16 %v1172
        %v1219 = vunpack.c.l.b16 %v1173
        %v1220 = vunpack.c.h.b16 %v1173
        %v1221 = vunpack.c.l.b16 %v1174
        %v1222 = vunpack.c.h.b16 %v1174
        %v1223 = vpack.c.b16 %v1191, %v1191
        %v1224 = vpack.c.b16 %v1192, %v1192
        %v1225 = vpack.c.b16 %v1193, %v1193
        %v1226 = vpack.c.b16 %v1194, %v1194
        %v1227 = vpack.c.b16 %v1195, %v1195
        %v1228 = vpack.c.b16 %v1196, %v1196
        %v1229 = vpack.c.b16 %v1197, %v1197
        %v1230 = vpack.c.b16 %v1198, %v1198
        %v1231 = vpack.c.b16 %v1199, %v1199
        %v1232 = vpack.c.b16 %v1200, %v1200
        %v1233 = vpack.c.b16 %v1201, %v1201
        %v1234 = vpack.c.b16 %v1202, %v1202
        %v1235 = vpack.c.b16 %v1203, %v1203
        %v1236 = vpack.c.b16 %v1204, %v1204
        %v1237 = vpack.c.b16 %v1205, %v1205
        %v1238 = vpack.c.b16 %v1206, %v1206
        %v1239 = vpack.c.b16 %v1207, %v1207
        %v1240 = vpack.c.b16 %v1208, %v1208
        %v1241 = vpack.c.b16 %v1209, %v1209
        %v1242 = vpack.c.b16 %v1210, %v1210
        %v1243 = vpack.c.b16 %v1211, %v1211
        %v1244 = vpack.c.b16 %v1212, %v1212
        %v1245 = vpack.c.b16 %v1213, %v1213
        %v1246 = vpack.c.b16 %v1214, %v1214
        %v1247 = vpack.c.b16 %v1215, %v1215
        %v1248 = vpack.c.b16 %v1216, %v1216
        %v1249 = vpack.c.b16 %v1217, %v1217
        %v1250 = vpack.c.b16 %v1218, %v1218
        %v1251 = vpack.c.b16 %v1219, %v1219
        %v1252 = vpack.c.b16 %v1220, %v1220
        %v1253 = vpack.c.b16 %v1221, %v1221
        %v1254 = vpack.c.b16 %v1222, %v1222
        %vm1287 = vcmask 76800
        %1288 = vst.msk [vmem:[%s280] sm:$0xf] %vm1287, %v1223
        %1289 = vst.msk [vmem:[%s280 + $0x4] sm:$0xf] %vm1287, %v1224
        %1290 = vst.msk [vmem:[%s280 + $0x8] sm:$0xf] %vm1287, %v1225
        %1291 = vst.msk [vmem:[%s280 + $0xc] sm:$0xf] %vm1287, %v1226
        %1292 = vst.msk [vmem:[%s280 + $0x10] sm:$0xf] %vm1287, %v1227
        %1293 = vst.msk [vmem:[%s280 + $0x14] sm:$0xf] %vm1287, %v1228
        %1294 = vst.msk [vmem:[%s280 + $0x18] sm:$0xf] %vm1287, %v1229
        %1295 = vst.msk [vmem:[%s280 + $0x1c] sm:$0xf] %vm1287, %v1230
        %1296 = vst.msk [vmem:[%s280 + $0x20] sm:$0xf] %vm1287, %v1231
        %1297 = vst.msk [vmem:[%s280 + $0x24] sm:$0xf] %vm1287, %v1232
        %1298 = vst.msk [vmem:[%s280 + $0x28] sm:$0xf] %vm1287, %v1233
        %1299 = vst.msk [vmem:[%s280 + $0x2c] sm:$0xf] %vm1287, %v1234
        %1300 = vst.msk [vmem:[%s280 + $0x30] sm:$0xf] %vm1287, %v1235
        %1301 = vst.msk [vmem:[%s280 + $0x34] sm:$0xf] %vm1287, %v1236
        %1302 = vst.msk [vmem:[%s280 + $0x38] sm:$0xf] %vm1287, %v1237
        %1303 = vst.msk [vmem:[%s280 + $0x3c] sm:$0xf] %vm1287, %v1238
        %1304 = vst.msk [vmem:[%s280 + $0x40] sm:$0xf] %vm1287, %v1239
        %1305 = vst.msk [vmem:[%s280 + $0x44] sm:$0xf] %vm1287, %v1240
        %1306 = vst.msk [vmem:[%s280 + $0x48] sm:$0xf] %vm1287, %v1241
        %1307 = vst.msk [vmem:[%s280 + $0x4c] sm:$0xf] %vm1287, %v1242
        %1308 = vst.msk [vmem:[%s280 + $0x50] sm:$0xf] %vm1287, %v1243
        %1309 = vst.msk [vmem:[%s280 + $0x54] sm:$0xf] %vm1287, %v1244
        %1310 = vst.msk [vmem:[%s280 + $0x58] sm:$0xf] %vm1287, %v1245
        %1311 = vst.msk [vmem:[%s280 + $0x5c] sm:$0xf] %vm1287, %v1246
        %1312 = vst.msk [vmem:[%s280 + $0x60] sm:$0xf] %vm1287, %v1247
        %1313 = vst.msk [vmem:[%s280 + $0x64] sm:$0xf] %vm1287, %v1248
        %1314 = vst.msk [vmem:[%s280 + $0x68] sm:$0xf] %vm1287, %v1249
        %1315 = vst.msk [vmem:[%s280 + $0x6c] sm:$0xf] %vm1287, %v1250
        %1316 = vst.msk [vmem:[%s280 + $0x70] sm:$0xf] %vm1287, %v1251
        %1317 = vst.msk [vmem:[%s280 + $0x74] sm:$0xf] %vm1287, %v1252
        %1318 = vst.msk [vmem:[%s280 + $0x78] sm:$0xf] %vm1287, %v1253
        %1319 = vst.msk [vmem:[%s280 + $0x7c] sm:$0xf] %vm1287, %v1254
        %s1320 = sand.u32 %s178, 1
        %s1321 = sand.u32 %s178, 1
        %s1322 = smul.addr %s1321, 128
        %s1323 = scalar_lea.vmem [#allocation2], %s1322
        // Predicated region
        $region49: #{tpu_custom_call.1} parent=47 // pred_check
          %p1324 = pneg %p188
        $region50: #{tpu_custom_call.1} parent=47 // pred_check_branch
          %1326 = sbr.rel (%p1324) target = $region52
        $region51: #{tpu_custom_call.1} parent=47 // pred_region
          %s1327 = smul.u32 32, %s18
          %s1328 = ssub.s32 125, %s1327
          %p1329 = scmp.lt.s32.totalorder %s1328, 32
          %s1330 = scalar_select %p1329, %s1328, 32
          %s1331 = smul.u32 64, %s1330
          %p1332 = scmp.ne.s32.totalorder 0, %s1331
          %s1333 = smul.addr %s1327, 4
          %s1334 = scalar_lea.vmem %s7, %s1333
          // Predicated region
          $region53: #{tpu_custom_call.1} parent=51 // pred_check
            %p1335 = pneg %p1332
          $region54: #{tpu_custom_call.1} parent=51 // pred_check_branch
            %1337 = sbr.rel (%p1335) target = $region56
          $region55: #{tpu_custom_call.1} parent=51 // pred_region
            // Predicated region
            $region57: #{tpu_custom_call.1} parent=55 // pred_check
              _
            $region58: #{tpu_custom_call.1} parent=55 // pred_check_branch
              %1339 = sbr.rel target = $region60
            $region59: #{tpu_custom_call.1} parent=55 // pred_region
              // Predicated region
              $region79: #{tpu_custom_call.1} parent=59 // pred_check
                _
              $region80: #{tpu_custom_call.1} parent=59 // pred_check_branch
                %1451 = sbr.rel (0) target = $region82
              $region81: #{tpu_custom_call.1} parent=59 // pred_region
                %s1453 = ssub.s32 16, 1
                %s1454 = sshrl.u32 %s1330, 5
                // While loop
                $region83: #{tpu_custom_call.1} parent=81 // loop_pre_header
                  _
                $region84: #{tpu_custom_call.1} parent=81 // loop_header
                  %s1456 = sphi 0, %s1458
                  %p1457 = scmp.ge.s32.totalorder %s1456, %s1454
                  %s1461 = sphi 0, %s1530
                  %s1462 = sphi %s1323, %s1533
                  %s1463 = sphi %s1334, %s1534
                $region85: #{tpu_custom_call.1} parent=81 // loop_header_branch
                  %1460 = sbr.rel (%p1457) target = $region89
                $region86: #{tpu_custom_call.1} parent=81 // loop_body
                  %v1464 = vld [vmem:[%s1462] sm:%s1453]
                  %1465 = vst [vmem:[%s1463] sm:%s1453] %v1464
                  %v1466 = vld [vmem:[%s1462 + $0x4] sm:%s1453]
                  %1467 = vst [vmem:[%s1463 + $0x4] sm:%s1453] %v1466
                  %v1468 = vld [vmem:[%s1462 + $0x8] sm:%s1453]
                  %1469 = vst [vmem:[%s1463 + $0x8] sm:%s1453] %v1468
                  %v1470 = vld [vmem:[%s1462 + $0xc] sm:%s1453]
                  %1471 = vst [vmem:[%s1463 + $0xc] sm:%s1453] %v1470
                  %v1472 = vld [vmem:[%s1462 + $0x10] sm:%s1453]
                  %1473 = vst [vmem:[%s1463 + $0x10] sm:%s1453] %v1472
                  %v1474 = vld [vmem:[%s1462 + $0x14] sm:%s1453]
                  %1475 = vst [vmem:[%s1463 + $0x14] sm:%s1453] %v1474
                  %v1476 = vld [vmem:[%s1462 + $0x18] sm:%s1453]
                  %1477 = vst [vmem:[%s1463 + $0x18] sm:%s1453] %v1476
                  %v1478 = vld [vmem:[%s1462 + $0x1c] sm:%s1453]
                  %1479 = vst [vmem:[%s1463 + $0x1c] sm:%s1453] %v1478
                  %v1480 = vld [vmem:[%s1462 + $0x20] sm:%s1453]
                  %1481 = vst [vmem:[%s1463 + $0x20] sm:%s1453] %v1480
                  %v1482 = vld [vmem:[%s1462 + $0x24] sm:%s1453]
                  %1483 = vst [vmem:[%s1463 + $0x24] sm:%s1453] %v1482
                  %v1484 = vld [vmem:[%s1462 + $0x28] sm:%s1453]
                  %1485 = vst [vmem:[%s1463 + $0x28] sm:%s1453] %v1484
                  %v1486 = vld [vmem:[%s1462 + $0x2c] sm:%s1453]
                  %1487 = vst [vmem:[%s1463 + $0x2c] sm:%s1453] %v1486
                  %v1488 = vld [vmem:[%s1462 + $0x30] sm:%s1453]
                  %1489 = vst [vmem:[%s1463 + $0x30] sm:%s1453] %v1488
                  %v1490 = vld [vmem:[%s1462 + $0x34] sm:%s1453]
                  %1491 = vst [vmem:[%s1463 + $0x34] sm:%s1453] %v1490
                  %v1492 = vld [vmem:[%s1462 + $0x38] sm:%s1453]
                  %1493 = vst [vmem:[%s1463 + $0x38] sm:%s1453] %v1492
                  %v1494 = vld [vmem:[%s1462 + $0x3c] sm:%s1453]
                  %1495 = vst [vmem:[%s1463 + $0x3c] sm:%s1453] %v1494
                  %v1496 = vld [vmem:[%s1462 + $0x40] sm:%s1453]
                  %1497 = vst [vmem:[%s1463 + $0x40] sm:%s1453] %v1496
                  %v1498 = vld [vmem:[%s1462 + $0x44] sm:%s1453]
                  %1499 = vst [vmem:[%s1463 + $0x44] sm:%s1453] %v1498
                  %v1500 = vld [vmem:[%s1462 + $0x48] sm:%s1453]
                  %1501 = vst [vmem:[%s1463 + $0x48] sm:%s1453] %v1500
                  %v1502 = vld [vmem:[%s1462 + $0x4c] sm:%s1453]
                  %1503 = vst [vmem:[%s1463 + $0x4c] sm:%s1453] %v1502
                  %v1504 = vld [vmem:[%s1462 + $0x50] sm:%s1453]
                  %1505 = vst [vmem:[%s1463 + $0x50] sm:%s1453] %v1504
                  %v1506 = vld [vmem:[%s1462 + $0x54] sm:%s1453]
                  %1507 = vst [vmem:[%s1463 + $0x54] sm:%s1453] %v1506
                  %v1508 = vld [vmem:[%s1462 + $0x58] sm:%s1453]
                  %1509 = vst [vmem:[%s1463 + $0x58] sm:%s1453] %v1508
                  %v1510 = vld [vmem:[%s1462 + $0x5c] sm:%s1453]
                  %1511 = vst [vmem:[%s1463 + $0x5c] sm:%s1453] %v1510
                  %v1512 = vld [vmem:[%s1462 + $0x60] sm:%s1453]
                  %1513 = vst [vmem:[%s1463 + $0x60] sm:%s1453] %v1512
                  %v1514 = vld [vmem:[%s1462 + $0x64] sm:%s1453]
                  %1515 = vst [vmem:[%s1463 + $0x64] sm:%s1453] %v1514
                  %v1516 = vld [vmem:[%s1462 + $0x68] sm:%s1453]
                  %1517 = vst [vmem:[%s1463 + $0x68] sm:%s1453] %v1516
                  %v1518 = vld [vmem:[%s1462 + $0x6c] sm:%s1453]
                  %1519 = vst [vmem:[%s1463 + $0x6c] sm:%s1453] %v1518
                  %v1520 = vld [vmem:[%s1462 + $0x70] sm:%s1453]
                  %1521 = vst [vmem:[%s1463 + $0x70] sm:%s1453] %v1520
                  %v1522 = vld [vmem:[%s1462 + $0x74] sm:%s1453]
                  %1523 = vst [vmem:[%s1463 + $0x74] sm:%s1453] %v1522
                  %v1524 = vld [vmem:[%s1462 + $0x78] sm:%s1453]
                  %1525 = vst [vmem:[%s1463 + $0x78] sm:%s1453] %v1524
                  %v1526 = vld [vmem:[%s1462 + $0x7c] sm:%s1453]
                  %1527 = vst [vmem:[%s1463 + $0x7c] sm:%s1453] %v1526
                  %s1528 = sadd.s32 1, %s1461
                  %p1529 = scmp.ge.s32.totalorder %s1528, %s1454
                  %s1530 = scalar_select %p1529, 0, %s1528
                  %s1531 = smul.u32 %s1530, 128
                  %s1532 = smul.u32 %s1530, 128
                  %s1533 = scalar_lea.vmem %s1323, %s1531 [#allocation2]
                  %s1534 = scalar_lea.vmem %s1334, %s1532
                $region87: #{tpu_custom_call.1} parent=81 // loop_footer
                  %s1458 = sadd.s32 %s1456, 1
                $region88: #{tpu_custom_call.1} parent=81 // loop_footer_branch
                  %1455 = sbr.rel target = $region84
                $region89: #{tpu_custom_call.1} parent=81 // loop_exit
                  _
                %s1535 = sshrl.u32 %s1330, 5
                %s1536 = sand.u32 %s1330, 31
                %s1537 = smul.u32 %s1535, 32
                %s1538 = smul.u32 4, %s1537
                %s1539 = scalar_lea.vmem %s1323, %s1538 [#allocation2]
                %s1540 = smul.u32 4, %s1537
                %s1541 = scalar_lea.vmem %s1334, %s1540
                // While loop
                $region90: #{tpu_custom_call.1} parent=81 // loop_pre_header
                  _
                $region91: #{tpu_custom_call.1} parent=81 // loop_header
                  %s1543 = sphi 0, %s1545
                  %p1544 = scmp.ge.s32.totalorder %s1543, %s1536
                  %s1548 = sphi 0, %s1555
                  %s1549 = sphi %s1539, %s1558
                  %s1550 = sphi %s1541, %s1559
                $region92: #{tpu_custom_call.1} parent=81 // loop_header_branch
                  %1547 = sbr.rel (%p1544) target = $region96
                $region93: #{tpu_custom_call.1} parent=81 // loop_body
                  %v1551 = vld [vmem:[%s1549] sm:%s1453]
                  %1552 = vst [vmem:[%s1550] sm:%s1453] %v1551
                  %s1553 = sadd.s32 1, %s1548
                  %p1554 = scmp.ge.s32.totalorder %s1553, %s1536
                  %s1555 = scalar_select %p1554, 0, %s1553
                  %s1556 = smul.u32 %s1555, 4
                  %s1557 = smul.u32 %s1555, 4
                  %s1558 = scalar_lea.vmem %s1539, %s1556 [#allocation2]
                  %s1559 = scalar_lea.vmem %s1541, %s1557
                $region94: #{tpu_custom_call.1} parent=81 // loop_footer
                  %s1545 = sadd.s32 %s1543, 1
                $region95: #{tpu_custom_call.1} parent=81 // loop_footer_branch
                  %1542 = sbr.rel target = $region91
                $region96: #{tpu_custom_call.1} parent=81 // loop_exit
                  _
              $region82: #{tpu_custom_call.1} parent=59 // pred_fallthru
                _
            $region60: #{tpu_custom_call.1} parent=55 // pred_fallthru
              _
            // Predicated region
            $region61: #{tpu_custom_call.1} parent=55 // pred_check
              _
            $region62: #{tpu_custom_call.1} parent=55 // pred_check_branch
              %1341 = sbr.rel (0) target = $region64
            $region63: #{tpu_custom_call.1} parent=55 // pred_region
              %s1343 = ssub.s32 16, 1
              %s1344 = sshrl.u32 %s1330, 5
              // While loop
              $region65: #{tpu_custom_call.1} parent=63 // loop_pre_header
                _
              $region66: #{tpu_custom_call.1} parent=63 // loop_header
                %s1346 = sphi 0, %s1348
                %p1347 = scmp.ge.s32.totalorder %s1346, %s1344
                %s1351 = sphi 0, %s1420
                %s1352 = sphi %s1323, %s1423
                %s1353 = sphi %s1334, %s1424
              $region67: #{tpu_custom_call.1} parent=63 // loop_header_branch
                %1350 = sbr.rel (%p1347) target = $region71
              $region68: #{tpu_custom_call.1} parent=63 // loop_body
                %v1354 = vld [vmem:[%s1352] sm:%s1343]
                %1355 = vst [vmem:[%s1353] sm:%s1343] %v1354
                %v1356 = vld [vmem:[%s1352 + $0x4] sm:%s1343]
                %1357 = vst [vmem:[%s1353 + $0x4] sm:%s1343] %v1356
                %v1358 = vld [vmem:[%s1352 + $0x8] sm:%s1343]
                %1359 = vst [vmem:[%s1353 + $0x8] sm:%s1343] %v1358
                %v1360 = vld [vmem:[%s1352 + $0xc] sm:%s1343]
                %1361 = vst [vmem:[%s1353 + $0xc] sm:%s1343] %v1360
                %v1362 = vld [vmem:[%s1352 + $0x10] sm:%s1343]
                %1363 = vst [vmem:[%s1353 + $0x10] sm:%s1343] %v1362
                %v1364 = vld [vmem:[%s1352 + $0x14] sm:%s1343]
                %1365 = vst [vmem:[%s1353 + $0x14] sm:%s1343] %v1364
                %v1366 = vld [vmem:[%s1352 + $0x18] sm:%s1343]
                %1367 = vst [vmem:[%s1353 + $0x18] sm:%s1343] %v1366
                %v1368 = vld [vmem:[%s1352 + $0x1c] sm:%s1343]
                %1369 = vst [vmem:[%s1353 + $0x1c] sm:%s1343] %v1368
                %v1370 = vld [vmem:[%s1352 + $0x20] sm:%s1343]
                %1371 = vst [vmem:[%s1353 + $0x20] sm:%s1343] %v1370
                %v1372 = vld [vmem:[%s1352 + $0x24] sm:%s1343]
                %1373 = vst [vmem:[%s1353 + $0x24] sm:%s1343] %v1372
                %v1374 = vld [vmem:[%s1352 + $0x28] sm:%s1343]
                %1375 = vst [vmem:[%s1353 + $0x28] sm:%s1343] %v1374
                %v1376 = vld [vmem:[%s1352 + $0x2c] sm:%s1343]
                %1377 = vst [vmem:[%s1353 + $0x2c] sm:%s1343] %v1376
                %v1378 = vld [vmem:[%s1352 + $0x30] sm:%s1343]
                %1379 = vst [vmem:[%s1353 + $0x30] sm:%s1343] %v1378
                %v1380 = vld [vmem:[%s1352 + $0x34] sm:%s1343]
                %1381 = vst [vmem:[%s1353 + $0x34] sm:%s1343] %v1380
                %v1382 = vld [vmem:[%s1352 + $0x38] sm:%s1343]
                %1383 = vst [vmem:[%s1353 + $0x38] sm:%s1343] %v1382
                %v1384 = vld [vmem:[%s1352 + $0x3c] sm:%s1343]
                %1385 = vst [vmem:[%s1353 + $0x3c] sm:%s1343] %v1384
                %v1386 = vld [vmem:[%s1352 + $0x40] sm:%s1343]
                %1387 = vst [vmem:[%s1353 + $0x40] sm:%s1343] %v1386
                %v1388 = vld [vmem:[%s1352 + $0x44] sm:%s1343]
                %1389 = vst [vmem:[%s1353 + $0x44] sm:%s1343] %v1388
                %v1390 = vld [vmem:[%s1352 + $0x48] sm:%s1343]
                %1391 = vst [vmem:[%s1353 + $0x48] sm:%s1343] %v1390
                %v1392 = vld [vmem:[%s1352 + $0x4c] sm:%s1343]
                %1393 = vst [vmem:[%s1353 + $0x4c] sm:%s1343] %v1392
                %v1394 = vld [vmem:[%s1352 + $0x50] sm:%s1343]
                %1395 = vst [vmem:[%s1353 + $0x50] sm:%s1343] %v1394
                %v1396 = vld [vmem:[%s1352 + $0x54] sm:%s1343]
                %1397 = vst [vmem:[%s1353 + $0x54] sm:%s1343] %v1396
                %v1398 = vld [vmem:[%s1352 + $0x58] sm:%s1343]
                %1399 = vst [vmem:[%s1353 + $0x58] sm:%s1343] %v1398
                %v1400 = vld [vmem:[%s1352 + $0x5c] sm:%s1343]
                %1401 = vst [vmem:[%s1353 + $0x5c] sm:%s1343] %v1400
                %v1402 = vld [vmem:[%s1352 + $0x60] sm:%s1343]
                %1403 = vst [vmem:[%s1353 + $0x60] sm:%s1343] %v1402
                %v1404 = vld [vmem:[%s1352 + $0x64] sm:%s1343]
                %1405 = vst [vmem:[%s1353 + $0x64] sm:%s1343] %v1404
                %v1406 = vld [vmem:[%s1352 + $0x68] sm:%s1343]
                %1407 = vst [vmem:[%s1353 + $0x68] sm:%s1343] %v1406
                %v1408 = vld [vmem:[%s1352 + $0x6c] sm:%s1343]
                %1409 = vst [vmem:[%s1353 + $0x6c] sm:%s1343] %v1408
                %v1410 = vld [vmem:[%s1352 + $0x70] sm:%s1343]
                %1411 = vst [vmem:[%s1353 + $0x70] sm:%s1343] %v1410
                %v1412 = vld [vmem:[%s1352 + $0x74] sm:%s1343]
                %1413 = vst [vmem:[%s1353 + $0x74] sm:%s1343] %v1412
                %v1414 = vld [vmem:[%s1352 + $0x78] sm:%s1343]
                %1415 = vst [vmem:[%s1353 + $0x78] sm:%s1343] %v1414
                %v1416 = vld [vmem:[%s1352 + $0x7c] sm:%s1343]
                %1417 = vst [vmem:[%s1353 + $0x7c] sm:%s1343] %v1416
                %s1418 = sadd.s32 1, %s1351
                %p1419 = scmp.ge.s32.totalorder %s1418, %s1344
                %s1420 = scalar_select %p1419, 0, %s1418
                %s1421 = smul.u32 %s1420, 128
                %s1422 = smul.u32 %s1420, 128
                %s1423 = scalar_lea.vmem %s1323, %s1421 [#allocation2]
                %s1424 = scalar_lea.vmem %s1334, %s1422
              $region69: #{tpu_custom_call.1} parent=63 // loop_footer
                %s1348 = sadd.s32 %s1346, 1
              $region70: #{tpu_custom_call.1} parent=63 // loop_footer_branch
                %1345 = sbr.rel target = $region66
              $region71: #{tpu_custom_call.1} parent=63 // loop_exit
                _
              %s1425 = sshrl.u32 %s1330, 5
              %s1426 = sand.u32 %s1330, 31
              %s1427 = smul.u32 %s1425, 32
              %s1428 = smul.u32 4, %s1427
              %s1429 = scalar_lea.vmem %s1323, %s1428 [#allocation2]
              %s1430 = smul.u32 4, %s1427
              %s1431 = scalar_lea.vmem %s1334, %s1430
              // While loop
              $region72: #{tpu_custom_call.1} parent=63 // loop_pre_header
                _
              $region73: #{tpu_custom_call.1} parent=63 // loop_header
                %s1433 = sphi 0, %s1435
                %p1434 = scmp.ge.s32.totalorder %s1433, %s1426
                %s1438 = sphi 0, %s1445
                %s1439 = sphi %s1429, %s1448
                %s1440 = sphi %s1431, %s1449
              $region74: #{tpu_custom_call.1} parent=63 // loop_header_branch
                %1437 = sbr.rel (%p1434) target = $region78
              $region75: #{tpu_custom_call.1} parent=63 // loop_body
                %v1441 = vld [vmem:[%s1439] sm:%s1343]
                %1442 = vst [vmem:[%s1440] sm:%s1343] %v1441
                %s1443 = sadd.s32 1, %s1438
                %p1444 = scmp.ge.s32.totalorder %s1443, %s1426
                %s1445 = scalar_select %p1444, 0, %s1443
                %s1446 = smul.u32 %s1445, 4
                %s1447 = smul.u32 %s1445, 4
                %s1448 = scalar_lea.vmem %s1429, %s1446 [#allocation2]
                %s1449 = scalar_lea.vmem %s1431, %s1447
              $region76: #{tpu_custom_call.1} parent=63 // loop_footer
                %s1435 = sadd.s32 %s1433, 1
              $region77: #{tpu_custom_call.1} parent=63 // loop_footer_branch
                %1432 = sbr.rel target = $region73
              $region78: #{tpu_custom_call.1} parent=63 // loop_exit
                _
            $region64: #{tpu_custom_call.1} parent=55 // pred_fallthru
              _
          $region56: #{tpu_custom_call.1} parent=51 // pred_fallthru
            _
          %1560 = vnop
        $region52: #{tpu_custom_call.1} parent=47 // pred_fallthru
          _
      $region48: #{tpu_custom_call.1} parent=5 // pred_fallthru
        _
      %p1561 = scmp.le.s32.totalorder 2, %s13
      // Predicated region
      $region97: #{tpu_custom_call.1} parent=5 // pred_check
        %p1562 = pneg %p1561
      $region98: #{tpu_custom_call.1} parent=5 // pred_check_branch
        %1564 = sbr.rel (%p1562) target = $region100
      $region99: #{tpu_custom_call.1} parent=5 // pred_region
        %s1565 = ssub.s32 %s13, 2
        // Predicated region
        $region101: #{tpu_custom_call.1} parent=99 // pred_check
          %p1566 = pneg %p194
        $region102: #{tpu_custom_call.1} parent=99 // pred_check_branch
          %1568 = sbr.rel (%p1566) target = $region104
        $region103: #{tpu_custom_call.1} parent=99 // pred_region
          %s1569 = sand.u32 %s179, 1
          %s1570 = sand.u32 %s179, 1
          %s1571 = smul.addr %s1570, 128
          %s1572 = scalar_lea.vmem [#allocation2], %s1571
        $region104: #{tpu_custom_call.1} parent=99 // pred_fallthru
          _
      $region100: #{tpu_custom_call.1} parent=5 // pred_fallthru
        _
    $region6: #{tpu_custom_call.1} parent=1 // loop_footer
      %s17 = sadd.s32 1, %s13
    $region7: #{tpu_custom_call.1} parent=1 // loop_footer_branch
      %12 = sbr.rel target = $region3
    $region8: #{tpu_custom_call.1} parent=1 // loop_exit
      _

</llo_original>
